<compile_context>
chip_gen: v7x
topology: tpu7x:2x2x1
jax: 0.10.0
libtpu: 0.0.40
codegen_flags: <defaults>
</compile_context>

<pallas_src>
import jax
import jax.numpy as jnp
from jax import lax
from jax.experimental import pallas as pl
from jax.experimental.pallas import tpu as pltpu

LANE = 128  # pad every feature dim to one full lane width


def _round_up(v, m):
    return (v + m - 1) // m * m


def _pad2(a, rows, cols):
    out = jnp.zeros((rows, cols), a.dtype)
    return out.at[: a.shape[0], : a.shape[1]].set(a)


# ---------------------------------------------------------------------------
# Fused Pallas kernel: 3 MUSEBlocks + readout + final linear in one launch
# ---------------------------------------------------------------------------
def muse_pred_fused_kernel(src_ref, dst_ref, bat_ref, x_ref, ea_ref,
                           w_epo_ref, b_epo_ref, w1_ref, b1_ref,
                           w2_ref, b2_ref, w_lin_ref, b_lin_ref,
                           pred_ref):
    e = ea_ref.shape[0]          # num edges (padded)
    n = x_ref.shape[0]           # num nodes (padded)
    bsz = pred_ref.shape[0]      # batch size (num graphs)
    c = x_ref.shape[1]           # lane-padded channel width (128)
    nblk = w_epo_ref.shape[0]    # number of MUSE blocks
    f32 = jnp.float32
    bf16 = jnp.bfloat16

    # 0/1 gather / scatter / readout operators built in-kernel from int32
    # index vectors with a direct bool -> bf16 cast (exact values, no f32
    # temporary, no select pass).  Scatter / readout operators are built
    # directly transposed so no transpose op and no [E,N] HBM array exist.
    # Out-of-range indices (padding) yield all-zero rows/columns.
    src_oh = (lax.broadcasted_iota(jnp.int32, (e, n), 1)
              == src_ref[...]).astype(bf16)                          # [E, N]
    dst_oh_t = (lax.broadcasted_iota(jnp.int32, (n, e), 0)
                == dst_ref[...]).astype(bf16)                        # [N, E]
    bat_oh_t = (lax.broadcasted_iota(jnp.int32, (bsz, n), 0)
                == bat_ref[...]).astype(bf16)                        # [B, N]

    x0 = x_ref[...]                                                  # [N, C] f32
    x0_bf = x0.astype(bf16)
    ea0_bf = ea_ref[...].astype(bf16)                                # [E, C] bf16
    # Final-linear accumulator, initialized with the bias (hoisted broadcast).
    pred0 = jnp.broadcast_to(b_lin_ref[...], (bsz, c))

    def block(blk, carry):
        x, x_bf, ea_bf, pred = carry

        # ---- EGIN conv: message = relu(x[src] + Lin(edge_attr)) ----
        # Gather x[src] via one-hot matmul (bf16 cast of x done once / block).
        x_src = jnp.dot(src_oh, x_bf, preferred_element_type=f32)    # [E, C]

        # Fused edge GEMM: single [E,128]x[128,256] matmul computes both the
        # edge->node projection (left 128 lanes) and the edge feature update
        # (right 128 lanes), filling the 256-wide MXU on v6e/v7x.
        eo = (jnp.dot(ea_bf, w_epo_ref[blk], preferred_element_type=f32)
              + b_epo_ref[blk])                                      # [E, 2C]
        e_proj = eo[:, :c]
        new_ea_bf = jnp.maximum(eo[:, c:], 0.0).astype(bf16)         # [E, C]
        msg = jnp.maximum(x_src + e_proj, 0.0)                       # [E, C]

        # Scatter-add messages to destination nodes.
        agg = jnp.dot(dst_oh_t, msg.astype(bf16),
                      preferred_element_type=f32)                    # [N, C]

        # GIN node update MLP on (1 + eps) * x + agg, eps = 0.
        h = jnp.maximum(
            jnp.dot((x + agg).astype(bf16), w1_ref[blk],
                    preferred_element_type=f32) + b1_ref[blk], 0.0)
        new_x = jnp.maximum(
            jnp.dot(h.astype(bf16), w2_ref[blk],
                    preferred_element_type=f32) + b2_ref[blk], 0.0)  # [N, C]
        new_x_bf = new_x.astype(bf16)                                # reused twice

        # Graph-level readout (global add pool) + fused "concat + final
        # linear": accumulate this block's W_lin slice into pred.
        xg = jnp.dot(bat_oh_t, new_x_bf, preferred_element_type=f32)  # [B, C]
        pred = pred + jnp.dot(xg.astype(bf16), w_lin_ref[blk],
                              preferred_element_type=f32)

        return new_x, new_x_bf, new_ea_bf, pred

    _, _, _, pred = lax.fori_loop(0, nblk, block, (x0, x0_bf, ea0_bf, pred0))
    pred_ref[...] = pred


# ---------------------------------------------------------------------------
# Wrapper
# ---------------------------------------------------------------------------
def run_muse_pred(src_col, dst_row, batch_row, x_p, ea_p, params, batch_size):
    vmem = pl.BlockSpec(memory_space=pltpu.MemorySpace.VMEM)
    n, c = x_p.shape
    e = ea_p.shape[0]
    nblk = int(params["W_epo"].shape[0])

    arrs = (src_col, dst_row, batch_row, x_p, ea_p,
            params["W_epo"], params["b_epo"], params["W1"], params["b1"],
            params["W2"], params["b2"], params["W_lin"], params["b_lin"])

    # Advisory cost hint for XLA scheduling around the fused call.
    mm = 2 * c
    flops = nblk * (e * n * mm                # one-hot gather
                    + e * (2 * c) * mm        # fused 256-wide edge GEMM
                    + n * e * mm              # one-hot scatter-add
                    + 2 * n * c * mm          # node MLP
                    + batch_size * n * mm     # readout
                    + batch_size * c * mm)    # final-linear slice
    bytes_accessed = sum(int(a.size) * a.dtype.itemsize for a in arrs)
    bytes_accessed += batch_size * c * 4

    # VMEM budget from the actual residents (inputs + in-kernel one-hots +
    # activations) with 2x headroom, clamped to v7x's 64 MiB physical VMEM.
    resident = bytes_accessed
    resident += (2 * e * n + batch_size * n) * 2        # bf16 one-hot operators
    resident += 8 * (e + n) * c * 4                     # f32 activations/temps
    vmem_limit = min(2 * int(resident) + (4 << 20), 64 << 20)

    fn = pl.pallas_call(
        muse_pred_fused_kernel,
        out_shape=jax.ShapeDtypeStruct((batch_size, c), jnp.float32),
        in_specs=[vmem] * len(arrs),
        out_specs=vmem,
        compiler_params=pltpu.CompilerParams(vmem_limit_bytes=vmem_limit),
        cost_estimate=pl.CostEstimate(flops=flops, transcendentals=0,
                                      bytes_accessed=bytes_accessed),
    )
    return fn(*arrs)


def muse_pred_forward(x, edge_index, edge_attr, batch, batch_size, params,
                      num_classes):
    """MUSEPred.forward: stacked MUSEBlocks -> graph embeddings -> linear."""
    n = x.shape[0]
    e = edge_attr.shape[0]
    n_pad = _round_up(max(n, 8), LANE)
    e_pad = _round_up(max(e, 8), LANE)

    # Lane-dense zero padding (pad rows/cols of the weights are zero, so the
    # padded computation matches the unpadded one exactly on valid columns).
    x_p = _pad2(x, n_pad, LANE)
    ea_p = _pad2(edge_attr, e_pad, LANE)

    # Padded edges / nodes get out-of-range indices: their one-hot rows or
    # columns are all-zero, so padding never feeds real nodes or the readout.
    src = jnp.full((e_pad,), n_pad, jnp.int32).at[:e].set(
        edge_index[0].astype(jnp.int32))
    dst = jnp.full((e_pad,), n_pad, jnp.int32).at[:e].set(
        edge_index[1].astype(jnp.int32))
    bat = jnp.full((n_pad,), batch_size, jnp.int32).at[:n].set(
        batch.astype(jnp.int32))

    pred_p = run_muse_pred(src.reshape(e_pad, 1), dst.reshape(1, e_pad),
                           bat.reshape(1, n_pad), x_p, ea_p, params,
                           batch_size)
    # drop_out is None by default in MUSEPred -> no dropout applied.
    return pred_p[:, :num_classes]


# ---------------------------------------------------------------------------
# Parameter construction (deterministic, PyTorch-Linear-style uniform init)
# ---------------------------------------------------------------------------
def _linear_init(key, fan_in, fan_out):
    k_w, k_b = jax.random.split(key)
    bound = 1.0 / jnp.sqrt(jnp.float32(fan_in))
    w = jax.random.uniform(k_w, (fan_in, fan_out), jnp.float32, -bound, bound)
    b = jax.random.uniform(k_b, (1, fan_out), jnp.float32, -bound, bound)
    return w, b


def make_params(key, dims, num_classes):
    """dims: list of (cx_in, ce_in, hx, he) per block (logical, unpadded)."""
    nblk = len(dims)
    keys = jax.random.split(key, nblk + 1)
    w_epo, b_epo, w1, b1, w2, b2 = ([] for _ in range(6))
    hx_list = []
    for bk, (cx, ce, hx, he) in zip(keys[:nblk], dims):
        k0, k1, k2, k3 = jax.random.split(bk, 4)
        # Fused 256-wide RHS: left half = edge -> node-dim projection (W_ep),
        # right half = edge feature update (W_eo).  Both consume edge_attr.
        w_ep, bias_ep = _linear_init(k0, ce, cx)
        w_eo, bias_eo = _linear_init(k3, ce, he)
        w_f = jnp.zeros((LANE, 2 * LANE), jnp.float32)
        w_f = w_f.at[:ce, :cx].set(w_ep).at[:ce, LANE:LANE + he].set(w_eo)
        b_f = jnp.zeros((1, 2 * LANE), jnp.float32)
        b_f = b_f.at[:, :cx].set(bias_ep).at[:, LANE:LANE + he].set(bias_eo)
        w_epo.append(w_f)
        b_epo.append(b_f)

        w, b = _linear_init(k1, cx, hx)   # node MLP layer 1
        w1.append(_pad2(w, LANE, LANE)); b1.append(_pad2(b, 1, LANE))
        w, b = _linear_init(k2, hx, hx)   # node MLP layer 2
        w2.append(_pad2(w, LANE, LANE)); b2.append(_pad2(b, 1, LANE))
        hx_list.append(hx)

    # Final linear over the concat of per-block graph embeddings, split into
    # per-block slices so the kernel accumulates instead of concatenating.
    embd_length = sum(hx_list)
    w_lin_full, b_lin = _linear_init(keys[-1], embd_length, num_classes)
    w_lin = []
    off = 0
    for hx in hx_list:
        w_lin.append(_pad2(w_lin_full[off:off + hx], LANE, LANE))
        off += hx

    bf16, f32 = jnp.bfloat16, jnp.float32
    return {
        "W_epo": jnp.stack(w_epo).astype(bf16), "b_epo": jnp.stack(b_epo).astype(f32),
        "W1": jnp.stack(w1).astype(bf16),       "b1": jnp.stack(b1).astype(f32),
        "W2": jnp.stack(w2).astype(bf16),       "b2": jnp.stack(b2).astype(f32),
        "W_lin": jnp.stack(w_lin).astype(bf16),
        "b_lin": _pad2(b_lin, 1, LANE).astype(f32),
    }


# ---------------------------------------------------------------------------
if __name__ == "__main__":
    # Small synthetic graph problem.
    N_NODES = 16
    N_EDGES = 32
    IN_X = 8
    IN_E = 8
    HID_X = 32
    HID_E = 32
    OUT_X = 32
    OUT_E = 32
    NUM_CLASSES = 1
    BATCH_SIZE = 2

    key = jax.random.PRNGKey(0)
    k_x, k_ea, k_src, k_dst, k_par = jax.random.split(key, 5)

    x = jax.random.normal(k_x, (N_NODES, IN_X), jnp.float32)
    edge_attr = jax.random.normal(k_ea, (N_EDGES, IN_E), jnp.float32)
    src = jax.random.randint(k_src, (N_EDGES,), 0, N_NODES)
    dst = jax.random.randint(k_dst, (N_EDGES,), 0, N_NODES)
    edge_index = jnp.stack([src, dst], axis=0)                       # [2, E]
    batch = jnp.concatenate([jnp.zeros(N_NODES // 2, jnp.int32),
                             jnp.ones(N_NODES - N_NODES // 2, jnp.int32)])

    # Block channel schedule mirrors MUSEPred.__init__.
    dims = [(IN_X, IN_E, HID_X, HID_E),
            (HID_X, HID_E, HID_X, HID_E),
            (HID_X, HID_E, OUT_X, OUT_E)]
    params = make_params(k_par, dims, NUM_CLASSES)

    pred = muse_pred_forward(x, edge_index, edge_attr, batch, BATCH_SIZE,
                             params, NUM_CLASSES)
    jax.block_until_ready(pred)
    assert pred.shape == (BATCH_SIZE, NUM_CLASSES)
    assert bool(jnp.all(jnp.isfinite(pred)))
    print("KERNEL_OK")
</pallas_src>

<mosaic_0001>
module attributes {stable_mosaic.version = 11 : i64} {
  func.func @muse_pred_fused_kernel(%arg0: memref<128x1xi32, #tpu.memory_space<vmem>>, %arg1: memref<1x128xi32, #tpu.memory_space<vmem>>, %arg2: memref<1x128xi32, #tpu.memory_space<vmem>>, %arg3: memref<128x128xf32, #tpu.memory_space<vmem>>, %arg4: memref<128x128xf32, #tpu.memory_space<vmem>>, %arg5: memref<3x128x256xbf16, #tpu.memory_space<vmem>>, %arg6: memref<3x1x256xf32, #tpu.memory_space<vmem>>, %arg7: memref<3x128x128xbf16, #tpu.memory_space<vmem>>, %arg8: memref<3x1x128xf32, #tpu.memory_space<vmem>>, %arg9: memref<3x128x128xbf16, #tpu.memory_space<vmem>>, %arg10: memref<3x1x128xf32, #tpu.memory_space<vmem>>, %arg11: memref<3x128x128xbf16, #tpu.memory_space<vmem>>, %arg12: memref<1x128xf32, #tpu.memory_space<vmem>>, %arg13: memref<2x128xf32, #tpu.memory_space<vmem>>) attributes {dimension_semantics = [], scalar_prefetch = 0 : i64, scratch_operands = 0 : i64, tpu.core_type = #tpu.core_type<tc>} {
    %0 = tpu.iota {dimensions = array<i32: 1>} : vector<128x128xi32>
    %c0 = arith.constant 0 : index
    %c0_0 = arith.constant 0 : index
    %1 = vector.load %arg0[%c0, %c0_0] : memref<128x1xi32, #tpu.memory_space<vmem>>, vector<128x1xi32>
    %2 = vector.broadcast %1 : vector<128x1xi32> to vector<128x128xi32>
    %3 = arith.cmpi eq, %0, %2 : vector<128x128xi32>
    %4 = arith.extui %3 : vector<128x128xi1> to vector<128x128xi32>
    %5 = arith.sitofp %4 : vector<128x128xi32> to vector<128x128xf32>
    %6 = arith.truncf %5 : vector<128x128xf32> to vector<128x128xbf16>
    %7 = tpu.iota {dimensions = array<i32: 0>} : vector<128x128xi32>
    %c0_1 = arith.constant 0 : index
    %c0_2 = arith.constant 0 : index
    %8 = vector.load %arg1[%c0_1, %c0_2] : memref<1x128xi32, #tpu.memory_space<vmem>>, vector<1x128xi32>
    %9 = vector.broadcast %8 : vector<1x128xi32> to vector<128x128xi32>
    %10 = arith.cmpi eq, %7, %9 : vector<128x128xi32>
    %11 = arith.extui %10 : vector<128x128xi1> to vector<128x128xi32>
    %12 = arith.sitofp %11 : vector<128x128xi32> to vector<128x128xf32>
    %13 = arith.truncf %12 : vector<128x128xf32> to vector<128x128xbf16>
    %14 = tpu.iota {dimensions = array<i32: 0>} : vector<2x128xi32>
    %c0_3 = arith.constant 0 : index
    %c0_4 = arith.constant 0 : index
    %15 = vector.load %arg2[%c0_3, %c0_4] : memref<1x128xi32, #tpu.memory_space<vmem>>, vector<1x128xi32>
    %16 = vector.broadcast %15 : vector<1x128xi32> to vector<2x128xi32>
    %17 = arith.cmpi eq, %14, %16 : vector<2x128xi32>
    %18 = arith.extui %17 : vector<2x128xi1> to vector<2x128xi32>
    %19 = arith.sitofp %18 : vector<2x128xi32> to vector<2x128xf32>
    %20 = arith.truncf %19 : vector<2x128xf32> to vector<2x128xbf16>
    %c0_5 = arith.constant 0 : index
    %c0_6 = arith.constant 0 : index
    %21 = vector.load %arg3[%c0_5, %c0_6] : memref<128x128xf32, #tpu.memory_space<vmem>>, vector<128x128xf32>
    %22 = arith.truncf %21 : vector<128x128xf32> to vector<128x128xbf16>
    %c0_7 = arith.constant 0 : index
    %c0_8 = arith.constant 0 : index
    %23 = vector.load %arg4[%c0_7, %c0_8] : memref<128x128xf32, #tpu.memory_space<vmem>>, vector<128x128xf32>
    %24 = arith.truncf %23 : vector<128x128xf32> to vector<128x128xbf16>
    %c0_9 = arith.constant 0 : index
    %c0_10 = arith.constant 0 : index
    %25 = vector.load %arg12[%c0_9, %c0_10] : memref<1x128xf32, #tpu.memory_space<vmem>>, vector<1x128xf32>
    %26 = vector.shape_cast %25 : vector<1x128xf32> to vector<1x128xf32>
    %27 = vector.broadcast %26 : vector<1x128xf32> to vector<2x128xf32>
    %c0_i32 = arith.constant 0 : i32
    %c3_i32 = arith.constant 3 : i32
    %28 = arith.addi %c0_i32, %c3_i32 : i32
    %c1_i32 = arith.constant 1 : i32
    %29:4 = scf.for %arg14 = %c0_i32 to %28 step %c1_i32 iter_args(%arg15 = %21, %arg16 = %22, %arg17 = %24, %arg18 = %27) -> (vector<128x128xf32>, vector<128x128xbf16>, vector<128x128xbf16>, vector<2x128xf32>)  : i32 {
      %cst = arith.constant dense<0.000000e+00> : vector<128x128xf32>
      %31 = tpu.matmul %6, %arg16, %cst {dimension_numbers = #tpu.dot_dimension_numbers<[1], [0], [0], [1], [0, 0, 1, 1], [], []>} : vector<128x128xbf16>, vector<128x128xbf16>, vector<128x128xf32> -> vector<128x128xf32>
      %32 = arith.index_cast %arg14 : i32 to index
      %c0_14 = arith.constant 0 : index
      %c0_15 = arith.constant 0 : index
      %33 = vector.load %arg5[%32, %c0_14, %c0_15] : memref<3x128x256xbf16, #tpu.memory_space<vmem>>, vector<1x128x256xbf16>
      %34 = vector.shape_cast %33 : vector<1x128x256xbf16> to vector<128x256xbf16>
      %cst_16 = arith.constant dense<0.000000e+00> : vector<128x256xf32>
      %35 = tpu.matmul %arg17, %34, %cst_16 {dimension_numbers = #tpu.dot_dimension_numbers<[1], [0], [0], [1], [0, 0, 1, 1], [], []>} : vector<128x128xbf16>, vector<128x256xbf16>, vector<128x256xf32> -> vector<128x256xf32>
      %36 = arith.index_cast %arg14 : i32 to index
      %c0_17 = arith.constant 0 : index
      %c0_18 = arith.constant 0 : index
      %37 = vector.load %arg6[%36, %c0_17, %c0_18] : memref<3x1x256xf32, #tpu.memory_space<vmem>>, vector<1x1x256xf32>
      %38 = vector.shape_cast %37 : vector<1x1x256xf32> to vector<1x256xf32>
      %39 = vector.broadcast %38 : vector<1x256xf32> to vector<128x256xf32>
      %40 = arith.addf %35, %39 : vector<128x256xf32>
      %41 = vector.extract_strided_slice %40 {offsets = [0, 0], sizes = [128, 128], strides = [1, 1]} : vector<128x256xf32> to vector<128x128xf32>
      %42 = vector.extract_strided_slice %40 {offsets = [0, 128], sizes = [128, 128], strides = [1, 1]} : vector<128x256xf32> to vector<128x128xf32>
      %cst_19 = arith.constant 0.000000e+00 : f32
      %43 = vector.broadcast %cst_19 : f32 to vector<128x128xf32>
      %44 = arith.maximumf %42, %43 : vector<128x128xf32>
      %45 = arith.truncf %44 : vector<128x128xf32> to vector<128x128xbf16>
      %46 = arith.addf %31, %41 : vector<128x128xf32>
      %cst_20 = arith.constant 0.000000e+00 : f32
      %47 = vector.broadcast %cst_20 : f32 to vector<128x128xf32>
      %48 = arith.maximumf %46, %47 : vector<128x128xf32>
      %49 = arith.truncf %48 : vector<128x128xf32> to vector<128x128xbf16>
      %cst_21 = arith.constant dense<0.000000e+00> : vector<128x128xf32>
      %50 = tpu.matmul %13, %49, %cst_21 {dimension_numbers = #tpu.dot_dimension_numbers<[1], [0], [0], [1], [0, 0, 1, 1], [], []>} : vector<128x128xbf16>, vector<128x128xbf16>, vector<128x128xf32> -> vector<128x128xf32>
      %51 = arith.addf %arg15, %50 : vector<128x128xf32>
      %52 = arith.truncf %51 : vector<128x128xf32> to vector<128x128xbf16>
      %53 = arith.index_cast %arg14 : i32 to index
      %c0_22 = arith.constant 0 : index
      %c0_23 = arith.constant 0 : index
      %54 = vector.load %arg7[%53, %c0_22, %c0_23] : memref<3x128x128xbf16, #tpu.memory_space<vmem>>, vector<1x128x128xbf16>
      %55 = vector.shape_cast %54 : vector<1x128x128xbf16> to vector<128x128xbf16>
      %cst_24 = arith.constant dense<0.000000e+00> : vector<128x128xf32>
      %56 = tpu.matmul %52, %55, %cst_24 {dimension_numbers = #tpu.dot_dimension_numbers<[1], [0], [0], [1], [0, 0, 1, 1], [], []>} : vector<128x128xbf16>, vector<128x128xbf16>, vector<128x128xf32> -> vector<128x128xf32>
      %57 = arith.index_cast %arg14 : i32 to index
      %c0_25 = arith.constant 0 : index
      %c0_26 = arith.constant 0 : index
      %58 = vector.load %arg8[%57, %c0_25, %c0_26] : memref<3x1x128xf32, #tpu.memory_space<vmem>>, vector<1x1x128xf32>
      %59 = vector.shape_cast %58 : vector<1x1x128xf32> to vector<1x128xf32>
      %60 = vector.broadcast %59 : vector<1x128xf32> to vector<128x128xf32>
      %61 = arith.addf %56, %60 : vector<128x128xf32>
      %cst_27 = arith.constant 0.000000e+00 : f32
      %62 = vector.broadcast %cst_27 : f32 to vector<128x128xf32>
      %63 = arith.maximumf %61, %62 : vector<128x128xf32>
      %64 = arith.truncf %63 : vector<128x128xf32> to vector<128x128xbf16>
      %65 = arith.index_cast %arg14 : i32 to index
      %c0_28 = arith.constant 0 : index
      %c0_29 = arith.constant 0 : index
      %66 = vector.load %arg9[%65, %c0_28, %c0_29] : memref<3x128x128xbf16, #tpu.memory_space<vmem>>, vector<1x128x128xbf16>
      %67 = vector.shape_cast %66 : vector<1x128x128xbf16> to vector<128x128xbf16>
      %cst_30 = arith.constant dense<0.000000e+00> : vector<128x128xf32>
      %68 = tpu.matmul %64, %67, %cst_30 {dimension_numbers = #tpu.dot_dimension_numbers<[1], [0], [0], [1], [0, 0, 1, 1], [], []>} : vector<128x128xbf16>, vector<128x128xbf16>, vector<128x128xf32> -> vector<128x128xf32>
      %69 = arith.index_cast %arg14 : i32 to index
      %c0_31 = arith.constant 0 : index
      %c0_32 = arith.constant 0 : index
      %70 = vector.load %arg10[%69, %c0_31, %c0_32] : memref<3x1x128xf32, #tpu.memory_space<vmem>>, vector<1x1x128xf32>
      %71 = vector.shape_cast %70 : vector<1x1x128xf32> to vector<1x128xf32>
      %72 = vector.broadcast %71 : vector<1x128xf32> to vector<128x128xf32>
      %73 = arith.addf %68, %72 : vector<128x128xf32>
      %cst_33 = arith.constant 0.000000e+00 : f32
      %74 = vector.broadcast %cst_33 : f32 to vector<128x128xf32>
      %75 = arith.maximumf %73, %74 : vector<128x128xf32>
      %76 = arith.truncf %75 : vector<128x128xf32> to vector<128x128xbf16>
      %cst_34 = arith.constant dense<0.000000e+00> : vector<2x128xf32>
      %77 = tpu.matmul %20, %76, %cst_34 {dimension_numbers = #tpu.dot_dimension_numbers<[1], [0], [0], [1], [0, 0, 1, 1], [], []>} : vector<2x128xbf16>, vector<128x128xbf16>, vector<2x128xf32> -> vector<2x128xf32>
      %78 = arith.truncf %77 : vector<2x128xf32> to vector<2x128xbf16>
      %79 = arith.index_cast %arg14 : i32 to index
      %c0_35 = arith.constant 0 : index
      %c0_36 = arith.constant 0 : index
      %80 = vector.load %arg11[%79, %c0_35, %c0_36] : memref<3x128x128xbf16, #tpu.memory_space<vmem>>, vector<1x128x128xbf16>
      %81 = vector.shape_cast %80 : vector<1x128x128xbf16> to vector<128x128xbf16>
      %cst_37 = arith.constant dense<0.000000e+00> : vector<2x128xf32>
      %82 = tpu.matmul %78, %81, %cst_37 {dimension_numbers = #tpu.dot_dimension_numbers<[1], [0], [0], [1], [0, 0, 1, 1], [], []>} : vector<2x128xbf16>, vector<128x128xbf16>, vector<2x128xf32> -> vector<2x128xf32>
      %83 = arith.addf %arg18, %82 : vector<2x128xf32>
      scf.yield %75, %76, %45, %83 : vector<128x128xf32>, vector<128x128xbf16>, vector<128x128xbf16>, vector<2x128xf32>
    }
    %c3_i32_11 = arith.constant 3 : i32
    %c0_12 = arith.constant 0 : index
    %c0_13 = arith.constant 0 : index
    %30 = vector.load %arg13[%c0_12, %c0_13] : memref<2x128xf32, #tpu.memory_space<vmem>>, vector<2x128xf32>
    tpu.vector_store %arg13[%c0_12, %c0_13], %29#3 {strides = array<i32>} : memref<2x128xf32, #tpu.memory_space<vmem>>, vector<2x128xf32>,
    return
  }
}

</mosaic_0001>

<llo_original>
// kernel: tpu_custom_call.1
$region0: #{tpu_custom_call.1}
  #allocation0 [shape = 'u32[]', space=smem, size = 0x4, offset = 0x4, fixed_abs, tag = 'smem constant byte address 0x4 - core index']
  #allocation1 [shape = 'u32[144,128]{1,0:T(1,128)}', space=vmem, size = 0x12000, scoped, tag = 'internal scratch']
  %s0 = inlined_call_operand.vmem [shape: s32[128,1], index: 0, kind: input, shape index: {}]
  %s1 = inlined_call_operand.hbm [shape: s32[1,128], index: 1, kind: input, shape index: {}]
  %s2 = inlined_call_operand.hbm [shape: s32[1,128], index: 2, kind: input, shape index: {}]
  %s3 = inlined_call_operand.vmem [shape: f32[128,128], index: 3, kind: input, shape index: {}]
  %s4 = inlined_call_operand.hbm [shape: f32[128,128], index: 4, kind: input, shape index: {}]
  %s5 = inlined_call_operand.hbm [shape: bf16[3,128,256], index: 5, kind: input, shape index: {}]
  %s6 = inlined_call_operand.vmem [shape: f32[3,1,256], index: 6, kind: input, shape index: {}]
  %s7 = inlined_call_operand.hbm [shape: bf16[3,128,128], index: 7, kind: input, shape index: {}]
  %s8 = inlined_call_operand.vmem [shape: f32[3,1,128], index: 8, kind: input, shape index: {}]
  %s9 = inlined_call_operand.hbm [shape: bf16[3,128,128], index: 9, kind: input, shape index: {}]
  %s10 = inlined_call_operand.vmem [shape: f32[3,1,128], index: 10, kind: input, shape index: {}]
  %s11 = inlined_call_operand.hbm [shape: bf16[3,128,128], index: 11, kind: input, shape index: {}]
  %s12 = inlined_call_operand.vmem [shape: f32[1,128], index: 12, kind: input, shape index: {}]
  %s13 = inlined_call_operand.hbm [shape: f32[2,128], index: 13, kind: output, shape index: {}]
  %s14 = sld [smem:[#allocation0]]
  $region97: #{tpu_custom_call.1} parent=0
    _
  %s16 = ssub.s32 1, %s14
  %s17 = scalar_select 0, %s16, %s14
  $region1: #{tpu_custom_call.1} parent=0
    #allocation2 [shape = 'u8[512]{0}', space=vmem, size = 0x400, scoped, tag = 'input window, operand 1, single buffered']
    #allocation3 [shape = 's32[1]{0}', space=sflag, size = 0x4, scoped, tag = 'scoped memory for tpu_custom_call.1']
    #allocation4 [shape = 's32[1]{0}', space=sflag, size = 0x4, scoped, tag = 'scoped memory for tpu_custom_call.1']
    #allocation5 [shape = 'u8[512]{0}', space=vmem, size = 0x400, scoped, tag = 'input window, operand 2, single buffered']
    #allocation6 [shape = 's32[1]{0}', space=sflag, size = 0x4, scoped, tag = 'scoped memory for tpu_custom_call.1']
    #allocation7 [shape = 'u8[65536]{0}', space=vmem, size = 0x10000, scoped, tag = 'input window, operand 4, single buffered']
    #allocation8 [shape = 'u8[196608]{0}', space=vmem, size = 0x30000, scoped, tag = 'input window, operand 5, single buffered']
    #allocation9 [shape = 's32[1]{0}', space=sflag, size = 0x4, scoped, tag = 'scoped memory for tpu_custom_call.1']
    #allocation10 [shape = 'u8[98304]{0}', space=vmem, size = 0x18000, scoped, tag = 'input window, operand 7, single buffered']
    #allocation11 [shape = 'u8[98304]{0}', space=vmem, size = 0x18000, scoped, tag = 'input window, operand 9, single buffered']
    #allocation12 [shape = 's32[1]{0}', space=sflag, size = 0x4, scoped, tag = 'scoped memory for tpu_custom_call.1']
    #allocation13 [shape = 'u8[98304]{0}', space=vmem, size = 0x18000, scoped, tag = 'input window, operand 11, single buffered']
    #allocation14 [shape = 'u8[1024]{0}', space=vmem, size = 0x400, scoped, tag = 'output window, operand 0, single buffered']
    %18 = vsyncpa [#allocation3], 0
    %19 = vsyncpa [#allocation6], 0
    %20 = vsyncpa [#allocation9], 0
    %21 = vsyncpa [#allocation12], 0
    %22 = vsyncpa [#allocation4], 0
    // Predicated region
    $region2: #{tpu_custom_call.1} parent=1 // pred_check
      _
    $region3: #{tpu_custom_call.1} parent=1 // pred_check_branch
      %24 = sbr.rel (0) target = $region5
    $region4: #{tpu_custom_call.1} parent=1 // pred_region
      _
    $region5: #{tpu_custom_call.1} parent=1 // pred_fallthru
      _
    // Predicated region
    $region6: #{tpu_custom_call.1} parent=1 // pred_check
      _
    $region7: #{tpu_custom_call.1} parent=1 // pred_check_branch
      %26 = sbr.rel (0) target = $region9
    $region8: #{tpu_custom_call.1} parent=1 // pred_region
      %s28 = ssub.s32 16, 16
      %29 = vsyncadd [#allocation3], %s28
      %s31 = sshll.u32 [#allocation2], 4
      %s32 = int_to_ptr.vmem [resolvable:$true] %s31
      %34 = dma.hbm_to_vmem [thread:$0]  %s1, 16, %s32, [#allocation3]
    $region9: #{tpu_custom_call.1} parent=1 // pred_fallthru
      _
    // Predicated region
    $region10: #{tpu_custom_call.1} parent=1 // pred_check
      _
    $region11: #{tpu_custom_call.1} parent=1 // pred_check_branch
      %36 = sbr.rel (0) target = $region13
    $region12: #{tpu_custom_call.1} parent=1 // pred_region
      %s38 = ssub.s32 16, 16
      %39 = vsyncadd [#allocation6], %s38
      %s41 = sshll.u32 [#allocation5], 4
      %s42 = int_to_ptr.vmem [resolvable:$true] %s41
      %44 = dma.hbm_to_vmem [thread:$0]  %s2, 16, %s42, [#allocation6]
    $region13: #{tpu_custom_call.1} parent=1 // pred_fallthru
      _
    // Predicated region
    $region14: #{tpu_custom_call.1} parent=1 // pred_check
      _
    $region15: #{tpu_custom_call.1} parent=1 // pred_check_branch
      %46 = sbr.rel (0) target = $region17
    $region16: #{tpu_custom_call.1} parent=1 // pred_region
      _
    $region17: #{tpu_custom_call.1} parent=1 // pred_fallthru
      _
    // Predicated region
    $region18: #{tpu_custom_call.1} parent=1 // pred_check
      _
    $region19: #{tpu_custom_call.1} parent=1 // pred_check_branch
      %48 = sbr.rel (0) target = $region21
    $region20: #{tpu_custom_call.1} parent=1 // pred_region
      %s50 = ssub.s32 2048, 2048
      %51 = vsyncadd [#allocation6], %s50
      %s52 = sshll.u32 [#allocation7], 4
      %s53 = int_to_ptr.vmem [resolvable:$true] %s52
      %58 = dma.hbm_to_vmem [thread:$0]  %s4, 2048, %s53, [#allocation6], 128, 128, 8
    $region21: #{tpu_custom_call.1} parent=1 // pred_fallthru
      _
    // Predicated region
    $region22: #{tpu_custom_call.1} parent=1 // pred_check
      _
    $region23: #{tpu_custom_call.1} parent=1 // pred_check_branch
      %60 = sbr.rel (0) target = $region25
    $region24: #{tpu_custom_call.1} parent=1 // pred_region
      %s62 = ssub.s32 6144, 6144
      %63 = vsyncadd [#allocation9], %s62
      %s64 = sshll.u32 [#allocation8], 4
      %s65 = int_to_ptr.vmem [resolvable:$true] %s64
      %70 = dma.hbm_to_vmem [thread:$0]  %s5, 6144, %s65, [#allocation9], 128, 128, 8
    $region25: #{tpu_custom_call.1} parent=1 // pred_fallthru
      _
    // Predicated region
    $region26: #{tpu_custom_call.1} parent=1 // pred_check
      _
    $region27: #{tpu_custom_call.1} parent=1 // pred_check_branch
      %72 = sbr.rel (0) target = $region29
    $region28: #{tpu_custom_call.1} parent=1 // pred_region
      _
    $region29: #{tpu_custom_call.1} parent=1 // pred_fallthru
      _
    // Predicated region
    $region30: #{tpu_custom_call.1} parent=1 // pred_check
      _
    $region31: #{tpu_custom_call.1} parent=1 // pred_check_branch
      %74 = sbr.rel (0) target = $region33
    $region32: #{tpu_custom_call.1} parent=1 // pred_region
      %s76 = ssub.s32 3072, 3072
      %77 = vsyncadd [#allocation9], %s76
      %s78 = sshll.u32 [#allocation10], 4
      %s79 = int_to_ptr.vmem [resolvable:$true] %s78
      %84 = dma.hbm_to_vmem [thread:$0]  %s7, 3072, %s79, [#allocation9], 64, 64, 4
    $region33: #{tpu_custom_call.1} parent=1 // pred_fallthru
      _
    // Predicated region
    $region34: #{tpu_custom_call.1} parent=1 // pred_check
      _
    $region35: #{tpu_custom_call.1} parent=1 // pred_check_branch
      %86 = sbr.rel (0) target = $region37
    $region36: #{tpu_custom_call.1} parent=1 // pred_region
      _
    $region37: #{tpu_custom_call.1} parent=1 // pred_fallthru
      _
    // Predicated region
    $region38: #{tpu_custom_call.1} parent=1 // pred_check
      _
    $region39: #{tpu_custom_call.1} parent=1 // pred_check_branch
      %88 = sbr.rel (0) target = $region41
    $region40: #{tpu_custom_call.1} parent=1 // pred_region
      %s90 = ssub.s32 3072, 3072
      %91 = vsyncadd [#allocation12], %s90
      %s92 = sshll.u32 [#allocation11], 4
      %s93 = int_to_ptr.vmem [resolvable:$true] %s92
      %98 = dma.hbm_to_vmem [thread:$0]  %s9, 3072, %s93, [#allocation12], 64, 64, 4
    $region41: #{tpu_custom_call.1} parent=1 // pred_fallthru
      _
    // Predicated region
    $region42: #{tpu_custom_call.1} parent=1 // pred_check
      _
    $region43: #{tpu_custom_call.1} parent=1 // pred_check_branch
      %100 = sbr.rel (0) target = $region45
    $region44: #{tpu_custom_call.1} parent=1 // pred_region
      _
    $region45: #{tpu_custom_call.1} parent=1 // pred_fallthru
      _
    // Predicated region
    $region46: #{tpu_custom_call.1} parent=1 // pred_check
      _
    $region47: #{tpu_custom_call.1} parent=1 // pred_check_branch
      %102 = sbr.rel (0) target = $region49
    $region48: #{tpu_custom_call.1} parent=1 // pred_region
      %s104 = ssub.s32 3072, 3072
      %105 = vsyncadd [#allocation12], %s104
      %s106 = sshll.u32 [#allocation13], 4
      %s107 = int_to_ptr.vmem [resolvable:$true] %s106
      %112 = dma.hbm_to_vmem [thread:$0]  %s11, 3072, %s107, [#allocation12], 64, 64, 4
    $region49: #{tpu_custom_call.1} parent=1 // pred_fallthru
      _
    // Predicated region
    $region50: #{tpu_custom_call.1} parent=1 // pred_check
      _
    $region51: #{tpu_custom_call.1} parent=1 // pred_check_branch
      %114 = sbr.rel (0) target = $region53
    $region52: #{tpu_custom_call.1} parent=1 // pred_region
      _
    $region53: #{tpu_custom_call.1} parent=1 // pred_fallthru
      _
    // Predicated region
    $region54: #{tpu_custom_call.1} parent=1 // pred_check
      _
    $region55: #{tpu_custom_call.1} parent=1 // pred_check_branch
      %116 = sbr.rel (0) target = $region57
    $region56: #{tpu_custom_call.1} parent=1 // pred_region
      %117 = dma.done [#allocation3], 16
    $region57: #{tpu_custom_call.1} parent=1 // pred_fallthru
      _
    // Predicated region
    $region58: #{tpu_custom_call.1} parent=1 // pred_check
      _
    $region59: #{tpu_custom_call.1} parent=1 // pred_check_branch
      %119 = sbr.rel (0) target = $region61
    $region60: #{tpu_custom_call.1} parent=1 // pred_region
      %120 = dma.done [#allocation6], 16
    $region61: #{tpu_custom_call.1} parent=1 // pred_fallthru
      _
    // Predicated region
    $region62: #{tpu_custom_call.1} parent=1 // pred_check
      _
    $region63: #{tpu_custom_call.1} parent=1 // pred_check_branch
      %122 = sbr.rel (0) target = $region65
    $region64: #{tpu_custom_call.1} parent=1 // pred_region
      %123 = dma.done [#allocation6], 2048
    $region65: #{tpu_custom_call.1} parent=1 // pred_fallthru
      _
    // Predicated region
    $region66: #{tpu_custom_call.1} parent=1 // pred_check
      _
    $region67: #{tpu_custom_call.1} parent=1 // pred_check_branch
      %125 = sbr.rel (0) target = $region69
    $region68: #{tpu_custom_call.1} parent=1 // pred_region
      %126 = dma.done [#allocation9], 6144
    $region69: #{tpu_custom_call.1} parent=1 // pred_fallthru
      _
    // Predicated region
    $region70: #{tpu_custom_call.1} parent=1 // pred_check
      _
    $region71: #{tpu_custom_call.1} parent=1 // pred_check_branch
      %128 = sbr.rel (0) target = $region73
    $region72: #{tpu_custom_call.1} parent=1 // pred_region
      %129 = dma.done [#allocation9], 3072
    $region73: #{tpu_custom_call.1} parent=1 // pred_fallthru
      _
    // Predicated region
    $region74: #{tpu_custom_call.1} parent=1 // pred_check
      _
    $region75: #{tpu_custom_call.1} parent=1 // pred_check_branch
      %131 = sbr.rel (0) target = $region77
    $region76: #{tpu_custom_call.1} parent=1 // pred_region
      %132 = dma.done [#allocation12], 3072
    $region77: #{tpu_custom_call.1} parent=1 // pred_fallthru
      _
    // Predicated region
    $region78: #{tpu_custom_call.1} parent=1 // pred_check
      _
    $region79: #{tpu_custom_call.1} parent=1 // pred_check_branch
      %134 = sbr.rel (0) target = $region81
    $region80: #{tpu_custom_call.1} parent=1 // pred_region
      %135 = dma.done [#allocation12], 3072
    $region81: #{tpu_custom_call.1} parent=1 // pred_fallthru
      _
    %v137 = vlaneseq
    %v138 = vand.u32 %v137, 127
    %v139 = vld [vmem:[%s0] sm:$0xff]
    %v140 = vld [vmem:[%s0 + $0x8] sm:$0xff]
    %v141 = vld [vmem:[%s0 + $0x10] sm:$0xff]
    %v142 = vld [vmem:[%s0 + $0x18] sm:$0xff]
    %v143 = vld [vmem:[%s0 + $0x20] sm:$0xff]
    %v144 = vld [vmem:[%s0 + $0x28] sm:$0xff]
    %v145 = vld [vmem:[%s0 + $0x30] sm:$0xff]
    %v146 = vld [vmem:[%s0 + $0x38] sm:$0xff]
    %v147 = vld [vmem:[%s0 + $0x40] sm:$0xff]
    %v148 = vld [vmem:[%s0 + $0x48] sm:$0xff]
    %v149 = vld [vmem:[%s0 + $0x50] sm:$0xff]
    %v150 = vld [vmem:[%s0 + $0x58] sm:$0xff]
    %v151 = vld [vmem:[%s0 + $0x60] sm:$0xff]
    %v152 = vld [vmem:[%s0 + $0x68] sm:$0xff]
    %v153 = vld [vmem:[%s0 + $0x70] sm:$0xff]
    %v154 = vld [vmem:[%s0 + $0x78] sm:$0xff]
    %155 = vset.pattern.permute.xlu0 0
    %156 = vperm.xlu0 %155, %v139
    %v157 = vpop.permute.xlu0 %156
    %158 = vset.pattern.permute.xlu0 0
    %159 = vperm.xlu0 %158, %v140
    %v160 = vpop.permute.xlu0 %159
    %161 = vset.pattern.permute.xlu0 0
    %162 = vperm.xlu0 %161, %v141
    %v163 = vpop.permute.xlu0 %162
    %164 = vset.pattern.permute.xlu0 0
    %165 = vperm.xlu0 %164, %v142
    %v166 = vpop.permute.xlu0 %165
    %167 = vset.pattern.permute.xlu0 0
    %168 = vperm.xlu0 %167, %v143
    %v169 = vpop.permute.xlu0 %168
    %170 = vset.pattern.permute.xlu0 0
    %171 = vperm.xlu0 %170, %v144
    %v172 = vpop.permute.xlu0 %171
    %173 = vset.pattern.permute.xlu0 0
    %174 = vperm.xlu0 %173, %v145
    %v175 = vpop.permute.xlu0 %174
    %176 = vset.pattern.permute.xlu0 0
    %177 = vperm.xlu0 %176, %v146
    %v178 = vpop.permute.xlu0 %177
    %179 = vset.pattern.permute.xlu0 0
    %180 = vperm.xlu0 %179, %v147
    %v181 = vpop.permute.xlu0 %180
    %182 = vset.pattern.permute.xlu0 0
    %183 = vperm.xlu0 %182, %v148
    %v184 = vpop.permute.xlu0 %183
    %185 = vset.pattern.permute.xlu0 0
    %186 = vperm.xlu0 %185, %v149
    %v187 = vpop.permute.xlu0 %186
    %188 = vset.pattern.permute.xlu0 0
    %189 = vperm.xlu0 %188, %v150
    %v190 = vpop.permute.xlu0 %189
    %191 = vset.pattern.permute.xlu0 0
    %192 = vperm.xlu0 %191, %v151
    %v193 = vpop.permute.xlu0 %192
    %194 = vset.pattern.permute.xlu0 0
    %195 = vperm.xlu0 %194, %v152
    %v196 = vpop.permute.xlu0 %195
    %197 = vset.pattern.permute.xlu0 0
    %198 = vperm.xlu0 %197, %v153
    %v199 = vpop.permute.xlu0 %198
    %200 = vset.pattern.permute.xlu0 0
    %201 = vperm.xlu0 %200, %v154
    %v202 = vpop.permute.xlu0 %201
    %vm203 = vcmp.eq.s32.totalorder %v138, %v157
    %vm204 = vcmp.eq.s32.totalorder %v138, %v160
    %vm205 = vcmp.eq.s32.totalorder %v138, %v163
    %vm206 = vcmp.eq.s32.totalorder %v138, %v166
    %vm207 = vcmp.eq.s32.totalorder %v138, %v169
    %vm208 = vcmp.eq.s32.totalorder %v138, %v172
    %vm209 = vcmp.eq.s32.totalorder %v138, %v175
    %vm210 = vcmp.eq.s32.totalorder %v138, %v178
    %vm211 = vcmp.eq.s32.totalorder %v138, %v181
    %vm212 = vcmp.eq.s32.totalorder %v138, %v184
    %vm213 = vcmp.eq.s32.totalorder %v138, %v187
    %vm214 = vcmp.eq.s32.totalorder %v138, %v190
    %vm215 = vcmp.eq.s32.totalorder %v138, %v193
    %vm216 = vcmp.eq.s32.totalorder %v138, %v196
    %vm217 = vcmp.eq.s32.totalorder %v138, %v199
    %vm218 = vcmp.eq.s32.totalorder %v138, %v202
    %v219 = vsel %vm203, 1, 0
    %v220 = vsel %vm204, 1, 0
    %v221 = vsel %vm205, 1, 0
    %v222 = vsel %vm206, 1, 0
    %v223 = vsel %vm207, 1, 0
    %v224 = vsel %vm208, 1, 0
    %v225 = vsel %vm209, 1, 0
    %v226 = vsel %vm210, 1, 0
    %v227 = vsel %vm211, 1, 0
    %v228 = vsel %vm212, 1, 0
    %v229 = vsel %vm213, 1, 0
    %v230 = vsel %vm214, 1, 0
    %v231 = vsel %vm215, 1, 0
    %v232 = vsel %vm216, 1, 0
    %v233 = vsel %vm217, 1, 0
    %v234 = vsel %vm218, 1, 0
    %v235 = vcvt.s32.f32 %v219
    %v236 = vcvt.s32.f32 %v220
    %v237 = vcvt.s32.f32 %v221
    %v238 = vcvt.s32.f32 %v222
    %v239 = vcvt.s32.f32 %v223
    %v240 = vcvt.s32.f32 %v224
    %v241 = vcvt.s32.f32 %v225
    %v242 = vcvt.s32.f32 %v226
    %v243 = vcvt.s32.f32 %v227
    %v244 = vcvt.s32.f32 %v228
    %v245 = vcvt.s32.f32 %v229
    %v246 = vcvt.s32.f32 %v230
    %v247 = vcvt.s32.f32 %v231
    %v248 = vcvt.s32.f32 %v232
    %v249 = vcvt.s32.f32 %v233
    %v250 = vcvt.s32.f32 %v234
    %v251 = vpack.c.bf16 %v236, %v235
    %v252 = vpack.c.bf16 %v238, %v237
    %v253 = vpack.c.bf16 %v240, %v239
    %v254 = vpack.c.bf16 %v242, %v241
    %v255 = vpack.c.bf16 %v244, %v243
    %v256 = vpack.c.bf16 %v246, %v245
    %v257 = vpack.c.bf16 %v248, %v247
    %v258 = vpack.c.bf16 %v250, %v249
    %v259 = vlaneseq
    %v260 = vshrl.u32 %v259, 7
    %v261 = vadd.s32 %v260, 8
    %v262 = vadd.s32 %v260, 16
    %v263 = vadd.s32 %v260, 24
    %v264 = vadd.s32 %v260, 32
    %v265 = vadd.s32 %v260, 40
    %v266 = vadd.s32 %v260, 48
    %v267 = vadd.s32 %v260, 56
    %v268 = vadd.s32 %v260, 64
    %v269 = vadd.s32 %v260, 72
    %v270 = vadd.s32 %v260, 80
    %v271 = vadd.s32 %v260, 88
    %v272 = vadd.s32 %v260, 96
    %v273 = vadd.s32 %v260, 104
    %v274 = vadd.s32 %v260, 112
    %v275 = vadd.s32 %v260, 120
    %v276 = vld [vmem:[#allocation2] sm:$0x1]
    %v277 = vlaneseq
    %v278 = vshrl.u32 %v277, 7
    %v279 = vsub.s32 0, %v278
    %v280 = vrot.slane %v276, %v279
    %vm281 = vcmp.eq.s32.totalorder %v260, %v280
    %vm282 = vcmp.eq.s32.totalorder %v261, %v280
    %vm283 = vcmp.eq.s32.totalorder %v262, %v280
    %vm284 = vcmp.eq.s32.totalorder %v263, %v280
    %vm285 = vcmp.eq.s32.totalorder %v264, %v280
    %vm286 = vcmp.eq.s32.totalorder %v265, %v280
    %vm287 = vcmp.eq.s32.totalorder %v266, %v280
    %vm288 = vcmp.eq.s32.totalorder %v267, %v280
    %vm289 = vcmp.eq.s32.totalorder %v268, %v280
    %vm290 = vcmp.eq.s32.totalorder %v269, %v280
    %vm291 = vcmp.eq.s32.totalorder %v270, %v280
    %vm292 = vcmp.eq.s32.totalorder %v271, %v280
    %vm293 = vcmp.eq.s32.totalorder %v272, %v280
    %vm294 = vcmp.eq.s32.totalorder %v273, %v280
    %vm295 = vcmp.eq.s32.totalorder %v274, %v280
    %vm296 = vcmp.eq.s32.totalorder %v275, %v280
    %v297 = vsel %vm281, 1, 0
    %v298 = vsel %vm282, 1, 0
    %v299 = vsel %vm283, 1, 0
    %v300 = vsel %vm284, 1, 0
    %v301 = vsel %vm285, 1, 0
    %v302 = vsel %vm286, 1, 0
    %v303 = vsel %vm287, 1, 0
    %v304 = vsel %vm288, 1, 0
    %v305 = vsel %vm289, 1, 0
    %v306 = vsel %vm290, 1, 0
    %v307 = vsel %vm291, 1, 0
    %v308 = vsel %vm292, 1, 0
    %v309 = vsel %vm293, 1, 0
    %v310 = vsel %vm294, 1, 0
    %v311 = vsel %vm295, 1, 0
    %v312 = vsel %vm296, 1, 0
    %v313 = vcvt.s32.f32 %v297
    %v314 = vcvt.s32.f32 %v298
    %v315 = vcvt.s32.f32 %v299
    %v316 = vcvt.s32.f32 %v300
    %v317 = vcvt.s32.f32 %v301
    %v318 = vcvt.s32.f32 %v302
    %v319 = vcvt.s32.f32 %v303
    %v320 = vcvt.s32.f32 %v304
    %v321 = vcvt.s32.f32 %v305
    %v322 = vcvt.s32.f32 %v306
    %v323 = vcvt.s32.f32 %v307
    %v324 = vcvt.s32.f32 %v308
    %v325 = vcvt.s32.f32 %v309
    %v326 = vcvt.s32.f32 %v310
    %v327 = vcvt.s32.f32 %v311
    %v328 = vcvt.s32.f32 %v312
    %v329 = vpack.c.bf16 %v314, %v313
    %v330 = vpack.c.bf16 %v316, %v315
    %v331 = vpack.c.bf16 %v318, %v317
    %v332 = vpack.c.bf16 %v320, %v319
    %v333 = vpack.c.bf16 %v322, %v321
    %v334 = vpack.c.bf16 %v324, %v323
    %v335 = vpack.c.bf16 %v326, %v325
    %v336 = vpack.c.bf16 %v328, %v327
    %v337 = vld [vmem:[#allocation5] sm:$0x1]
    %v338 = vlaneseq
    %v339 = vshrl.u32 %v338, 7
    %v340 = vsub.s32 0, %v339
    %v341 = vrot.slane %v337, %v340
    %vm342 = vcmp.eq.s32.totalorder %v260, %v341
    %v343 = vsel %vm342, 1, 0
    %v344 = vcvt.s32.f32 %v343
    %v345 = vpack.c.bf16 %v344, %v344
    %v346 = vld [vmem:[%s3] sm:$0xff]
    %v347 = vld [vmem:[%s3 + $0x8] sm:$0xff]
    %v348 = vld [vmem:[%s3 + $0x10] sm:$0xff]
    %v349 = vld [vmem:[%s3 + $0x18] sm:$0xff]
    %v350 = vld [vmem:[%s3 + $0x20] sm:$0xff]
    %v351 = vld [vmem:[%s3 + $0x28] sm:$0xff]
    %v352 = vld [vmem:[%s3 + $0x30] sm:$0xff]
    %v353 = vld [vmem:[%s3 + $0x38] sm:$0xff]
    %v354 = vld [vmem:[%s3 + $0x40] sm:$0xff]
    %v355 = vld [vmem:[%s3 + $0x48] sm:$0xff]
    %v356 = vld [vmem:[%s3 + $0x50] sm:$0xff]
    %v357 = vld [vmem:[%s3 + $0x58] sm:$0xff]
    %v358 = vld [vmem:[%s3 + $0x60] sm:$0xff]
    %v359 = vld [vmem:[%s3 + $0x68] sm:$0xff]
    %v360 = vld [vmem:[%s3 + $0x70] sm:$0xff]
    %v361 = vld [vmem:[%s3 + $0x78] sm:$0xff]
    %v362 = vpack.c.bf16 %v347, %v346
    %v363 = vpack.c.bf16 %v349, %v348
    %v364 = vpack.c.bf16 %v351, %v350
    %v365 = vpack.c.bf16 %v353, %v352
    %v366 = vpack.c.bf16 %v355, %v354
    %v367 = vpack.c.bf16 %v357, %v356
    %v368 = vpack.c.bf16 %v359, %v358
    %v369 = vpack.c.bf16 %v361, %v360
    %v370 = vld [vmem:[#allocation7] sm:$0xff]
    %v371 = vld [vmem:[#allocation7 + $0x8] sm:$0xff]
    %v372 = vld [vmem:[#allocation7 + $0x10] sm:$0xff]
    %v373 = vld [vmem:[#allocation7 + $0x18] sm:$0xff]
    %v374 = vld [vmem:[#allocation7 + $0x20] sm:$0xff]
    %v375 = vld [vmem:[#allocation7 + $0x28] sm:$0xff]
    %v376 = vld [vmem:[#allocation7 + $0x30] sm:$0xff]
    %v377 = vld [vmem:[#allocation7 + $0x38] sm:$0xff]
    %v378 = vld [vmem:[#allocation7 + $0x40] sm:$0xff]
    %v379 = vld [vmem:[#allocation7 + $0x48] sm:$0xff]
    %v380 = vld [vmem:[#allocation7 + $0x50] sm:$0xff]
    %v381 = vld [vmem:[#allocation7 + $0x58] sm:$0xff]
    %v382 = vld [vmem:[#allocation7 + $0x60] sm:$0xff]
    %v383 = vld [vmem:[#allocation7 + $0x68] sm:$0xff]
    %v384 = vld [vmem:[#allocation7 + $0x70] sm:$0xff]
    %v385 = vld [vmem:[#allocation7 + $0x78] sm:$0xff]
    %v386 = vpack.c.bf16 %v371, %v370
    %v387 = vpack.c.bf16 %v373, %v372
    %v388 = vpack.c.bf16 %v375, %v374
    %v389 = vpack.c.bf16 %v377, %v376
    %v390 = vpack.c.bf16 %v379, %v378
    %v391 = vpack.c.bf16 %v381, %v380
    %v392 = vpack.c.bf16 %v383, %v382
    %v393 = vpack.c.bf16 %v385, %v384
    %v394 = vld [vmem:[%s12] sm:$0x1]
    %v396 = vlaneseq
    %v397 = vshrl.u32 %v396, 7
    %v398 = vsub.s32 0, %v397
    %v399 = vrot.slane %v394, %v398
    loop: start=0, step=1, limit=3
    $region82: #{tpu_custom_call.1} parent=1 // loop_pre_header
      _
    $region83: #{tpu_custom_call.1} parent=1 // loop_header
      %s402 = sphi 0, %s406
      %p403 = scmp.ge.s32.totalorder %s402, 3
      %v407 = vphi %v346, %v1299
      %v408 = vphi %v347, %v1300
      %v409 = vphi %v348, %v1301
      %v410 = vphi %v349, %v1302
      %v411 = vphi %v350, %v1303
      %v412 = vphi %v351, %v1304
      %v413 = vphi %v352, %v1305
      %v414 = vphi %v353, %v1306
      %v415 = vphi %v354, %v1307
      %v416 = vphi %v355, %v1308
      %v417 = vphi %v356, %v1309
      %v418 = vphi %v357, %v1310
      %v419 = vphi %v358, %v1311
      %v420 = vphi %v359, %v1312
      %v421 = vphi %v360, %v1313
      %v422 = vphi %v361, %v1314
      %v423 = vphi %v362, %v1315
      %v424 = vphi %v363, %v1316
      %v425 = vphi %v364, %v1317
      %v426 = vphi %v365, %v1318
      %v427 = vphi %v366, %v1319
      %v428 = vphi %v367, %v1320
      %v429 = vphi %v368, %v1321
      %v430 = vphi %v369, %v1322
      %v431 = vphi %v386, %v682
      %v432 = vphi %v387, %v683
      %v433 = vphi %v388, %v684
      %v434 = vphi %v389, %v685
      %v435 = vphi %v390, %v686
      %v436 = vphi %v391, %v687
      %v437 = vphi %v392, %v688
      %v438 = vphi %v393, %v689
      %v439 = vphi %v399, %v1470
    $region84: #{tpu_custom_call.1} parent=1 // loop_header_branch
      %405 = sbr.rel (%p403) target = $region88
    $region85: #{tpu_custom_call.1} parent=1 // loop_body
      %s440 = smul.u32 %s402, 32
      %s441 = smul.addr %s440, 4
      %s442 = scalar_lea.vmem [#allocation8], %s441
      %v443 = vld [vmem:[%s442] sm:$0xff]
      %v444 = vld [vmem:[%s442 + $0x8] sm:$0xff]
      %v445 = vld [vmem:[%s442 + $0x10] sm:$0xff]
      %v446 = vld [vmem:[%s442 + $0x18] sm:$0xff]
      %v447 = vld [vmem:[%s442 + $0x20] sm:$0xff]
      %v448 = vld [vmem:[%s442 + $0x28] sm:$0xff]
      %v449 = vld [vmem:[%s442 + $0x30] sm:$0xff]
      %v450 = vld [vmem:[%s442 + $0x38] sm:$0xff]
      %v451 = vld [vmem:[%s442 + $0x40] sm:$0xff]
      %v452 = vld [vmem:[%s442 + $0x48] sm:$0xff]
      %v453 = vld [vmem:[%s442 + $0x50] sm:$0xff]
      %v454 = vld [vmem:[%s442 + $0x58] sm:$0xff]
      %v455 = vld [vmem:[%s442 + $0x60] sm:$0xff]
      %v456 = vld [vmem:[%s442 + $0x68] sm:$0xff]
      %v457 = vld [vmem:[%s442 + $0x70] sm:$0xff]
      %v458 = vld [vmem:[%s442 + $0x78] sm:$0xff]
      %s459 = smul.u32 %s402, 2
      %s460 = scalar_lea.vmem %s6, %s459
      %v461 = vld [vmem:[%s460] sm:$0x3]
      %v463 = vlaneseq
      %v464 = vshrl.u32 %v463, 7
      %v465 = vsub.s32 0, %v464
      %v466 = vrot.slane %v461, %v465
      %v467 = vlaneseq
      %v468 = vshrl.u32 %v467, 7
      %v469 = vsub.s32 1, %v468
      %v470 = vrot.slane %v461, %v469
      %v489 = vunpack.c.l.b16 %v443
      %v490 = vunpack.c.h.b16 %v443
      %v491 = vunpack.c.l.b16 %v444
      %v492 = vunpack.c.h.b16 %v444
      %v493 = vunpack.c.l.b16 %v445
      %v494 = vunpack.c.h.b16 %v445
      %v495 = vunpack.c.l.b16 %v446
      %v496 = vunpack.c.h.b16 %v446
      %v497 = vunpack.c.l.b16 %v447
      %v498 = vunpack.c.h.b16 %v447
      %v499 = vunpack.c.l.b16 %v448
      %v500 = vunpack.c.h.b16 %v448
      %v501 = vunpack.c.l.b16 %v449
      %v502 = vunpack.c.h.b16 %v449
      %v503 = vunpack.c.l.b16 %v450
      %v504 = vunpack.c.h.b16 %v450
      %v505 = vunpack.c.l.b16 %v451
      %v506 = vunpack.c.h.b16 %v451
      %v507 = vunpack.c.l.b16 %v452
      %v508 = vunpack.c.h.b16 %v452
      %v509 = vunpack.c.l.b16 %v453
      %v510 = vunpack.c.h.b16 %v453
      %v511 = vunpack.c.l.b16 %v454
      %v512 = vunpack.c.h.b16 %v454
      %v513 = vunpack.c.l.b16 %v455
      %v514 = vunpack.c.h.b16 %v455
      %v515 = vunpack.c.l.b16 %v456
      %v516 = vunpack.c.h.b16 %v456
      %v517 = vunpack.c.l.b16 %v457
      %v518 = vunpack.c.h.b16 %v457
      %v519 = vunpack.c.l.b16 %v458
      %v520 = vunpack.c.h.b16 %v458
      %v521 = vpack.c.b16 %v491, %v489
      %v522 = vpack.c.b16 %v492, %v490
      %v523 = vpack.c.b16 %v495, %v493
      %v524 = vpack.c.b16 %v496, %v494
      %v525 = vpack.c.b16 %v499, %v497
      %v526 = vpack.c.b16 %v500, %v498
      %v527 = vpack.c.b16 %v503, %v501
      %v528 = vpack.c.b16 %v504, %v502
      %v529 = vpack.c.b16 %v507, %v505
      %v530 = vpack.c.b16 %v508, %v506
      %v531 = vpack.c.b16 %v511, %v509
      %v532 = vpack.c.b16 %v512, %v510
      %v533 = vpack.c.b16 %v515, %v513
      %v534 = vpack.c.b16 %v516, %v514
      %v535 = vpack.c.b16 %v519, %v517
      %v536 = vpack.c.b16 %v520, %v518
      %553 = vmatprep.subr.bf16.mxu0 %v522
      %554 = vmatpush1.bf16.msra.mxu0 %v521
      %555 = vmatprep.subr.bf16.mxu0 %v524
      %556 = vmatpush1.bf16.msra.mxu0 %v523
      %557 = vmatprep.subr.bf16.mxu0 %v526
      %558 = vmatpush1.bf16.msra.mxu0 %v525
      %559 = vmatprep.subr.bf16.mxu0 %v528
      %560 = vmatpush1.bf16.msra.mxu0 %v527
      %561 = vmatprep.subr.bf16.mxu0 %v530
      %562 = vmatpush1.bf16.msra.mxu0 %v529
      %563 = vmatprep.subr.bf16.mxu0 %v532
      %564 = vmatpush1.bf16.msra.mxu0 %v531
      %565 = vmatprep.subr.bf16.mxu0 %v534
      %566 = vmatpush1.bf16.msra.mxu0 %v533
      %567 = vmatprep.subr.bf16.mxu0 %v536
      %568 = vmatpush1.bf16.msra.mxu0 %v535
      %569 = vmatprep.subr.bf16.mxu0 0
      %570 = vmatpush1.bf16.msra.mxu0 0
      %571 = vmatprep.subr.bf16.mxu0 0
      %572 = vmatpush1.bf16.msra.mxu0 0
      %573 = vmatprep.subr.bf16.mxu0 0
      %574 = vmatpush1.bf16.msra.mxu0 0
      %575 = vmatprep.subr.bf16.mxu0 0
      %576 = vmatpush1.bf16.msra.mxu0 0
      %577 = vmatprep.subr.bf16.mxu0 0
      %578 = vmatpush1.bf16.msra.mxu0 0
      %579 = vmatprep.subr.bf16.mxu0 0
      %580 = vmatpush1.bf16.msra.mxu0 0
      %581 = vmatprep.subr.bf16.mxu0 0
      %582 = vmatpush1.bf16.msra.mxu0 0
      %583 = vmatprep.subr.bf16.mxu0 0
      %584 = vmatpush1.bf16.msra.mxu0 0
      %585 = vmatprep.mubr.bf16.mxu0 0
      %586 = vmatmul.mubr.bf16.gmra.mrb[0].mxu0 %v431
      %v587 = vpop.f32.mrb[0].mxu0
      %v588 = vadd.f32 %v466, %v587
      %v589 = vpop.f32.mrb[0].mxu0
      %v590 = vadd.f32 %v470, %v589
      %v591 = vpop.f32.mrb[0].mxu0
      %v592 = vadd.f32 %v466, %v591
      %v593 = vpop.f32.mrb[0].mxu0
      %v594 = vadd.f32 %v470, %v593
      %595 = vmatprep.mubr.bf16.mxu0 0
      %596 = vmatmul.mubr.bf16.gmra.mrb[0].mxu0 %v432
      %v597 = vpop.f32.mrb[0].mxu0
      %v598 = vadd.f32 %v466, %v597
      %v599 = vpop.f32.mrb[0].mxu0
      %v600 = vadd.f32 %v470, %v599
      %v601 = vpop.f32.mrb[0].mxu0
      %v602 = vadd.f32 %v466, %v601
      %v603 = vpop.f32.mrb[0].mxu0
      %v604 = vadd.f32 %v470, %v603
      %605 = vmatprep.mubr.bf16.mxu0 0
      %606 = vmatmul.mubr.bf16.gmra.mrb[0].mxu0 %v433
      %v607 = vpop.f32.mrb[0].mxu0
      %v608 = vadd.f32 %v466, %v607
      %v609 = vpop.f32.mrb[0].mxu0
      %v610 = vadd.f32 %v470, %v609
      %v611 = vpop.f32.mrb[0].mxu0
      %v612 = vadd.f32 %v466, %v611
      %v613 = vpop.f32.mrb[0].mxu0
      %v614 = vadd.f32 %v470, %v613
      %615 = vmatprep.mubr.bf16.mxu0 0
      %616 = vmatmul.mubr.bf16.gmra.mrb[0].mxu0 %v434
      %v617 = vpop.f32.mrb[0].mxu0
      %v618 = vadd.f32 %v466, %v617
      %v619 = vpop.f32.mrb[0].mxu0
      %v620 = vadd.f32 %v470, %v619
      %v621 = vpop.f32.mrb[0].mxu0
      %v622 = vadd.f32 %v466, %v621
      %v623 = vpop.f32.mrb[0].mxu0
      %v624 = vadd.f32 %v470, %v623
      %625 = vmatprep.mubr.bf16.mxu0 0
      %626 = vmatmul.mubr.bf16.gmra.mrb[0].mxu0 %v435
      %v627 = vpop.f32.mrb[0].mxu0
      %v628 = vadd.f32 %v466, %v627
      %v629 = vpop.f32.mrb[0].mxu0
      %v630 = vadd.f32 %v470, %v629
      %v631 = vpop.f32.mrb[0].mxu0
      %v632 = vadd.f32 %v466, %v631
      %v633 = vpop.f32.mrb[0].mxu0
      %v634 = vadd.f32 %v470, %v633
      %635 = vmatprep.mubr.bf16.mxu0 0
      %636 = vmatmul.mubr.bf16.gmra.mrb[0].mxu0 %v436
      %v637 = vpop.f32.mrb[0].mxu0
      %v638 = vadd.f32 %v466, %v637
      %v639 = vpop.f32.mrb[0].mxu0
      %v640 = vadd.f32 %v470, %v639
      %v641 = vpop.f32.mrb[0].mxu0
      %v642 = vadd.f32 %v466, %v641
      %v643 = vpop.f32.mrb[0].mxu0
      %v644 = vadd.f32 %v470, %v643
      %645 = vmatprep.mubr.bf16.mxu0 0
      %646 = vmatmul.mubr.bf16.gmra.mrb[0].mxu0 %v437
      %v647 = vpop.f32.mrb[0].mxu0
      %v648 = vadd.f32 %v466, %v647
      %v649 = vpop.f32.mrb[0].mxu0
      %v650 = vadd.f32 %v470, %v649
      %v651 = vpop.f32.mrb[0].mxu0
      %v652 = vadd.f32 %v466, %v651
      %v653 = vpop.f32.mrb[0].mxu0
      %v654 = vadd.f32 %v470, %v653
      %655 = vmatprep.mubr.bf16.mxu0 0
      %656 = vmatmul.mubr.bf16.gmra.mrb[0].mxu0 %v438
      %v657 = vpop.f32.mrb[0].mxu0
      %v658 = vadd.f32 %v466, %v657
      %v659 = vpop.f32.mrb[0].mxu0
      %v660 = vadd.f32 %v470, %v659
      %v661 = vpop.f32.mrb[0].mxu0
      %v662 = vadd.f32 %v466, %v661
      %v663 = vpop.f32.mrb[0].mxu0
      %v664 = vadd.f32 %v470, %v663
      %665 = vdwg.mxu0
      %v666 = vmax.f32 %v590, 0.0
      %v667 = vmax.f32 %v594, 0.0
      %v668 = vmax.f32 %v600, 0.0
      %v669 = vmax.f32 %v604, 0.0
      %v670 = vmax.f32 %v610, 0.0
      %v671 = vmax.f32 %v614, 0.0
      %v672 = vmax.f32 %v620, 0.0
      %v673 = vmax.f32 %v624, 0.0
      %v674 = vmax.f32 %v630, 0.0
      %v675 = vmax.f32 %v634, 0.0
      %v676 = vmax.f32 %v640, 0.0
      %v677 = vmax.f32 %v644, 0.0
      %v678 = vmax.f32 %v650, 0.0
      %v679 = vmax.f32 %v654, 0.0
      %v680 = vmax.f32 %v660, 0.0
      %v681 = vmax.f32 %v664, 0.0
      %v682 = vpack.c.bf16 %v667, %v666
      %v683 = vpack.c.bf16 %v669, %v668
      %v684 = vpack.c.bf16 %v671, %v670
      %v685 = vpack.c.bf16 %v673, %v672
      %v686 = vpack.c.bf16 %v675, %v674
      %v687 = vpack.c.bf16 %v677, %v676
      %v688 = vpack.c.bf16 %v679, %v678
      %v689 = vpack.c.bf16 %v681, %v680
      %690 = vmatprep.subr.bf16.mxu0 0
      %691 = vmatpush1.bf16.msra.mxu0 %v423
      %692 = vmatprep.subr.bf16.mxu0 0
      %693 = vmatpush1.bf16.msra.mxu0 %v424
      %694 = vmatprep.subr.bf16.mxu0 0
      %695 = vmatpush1.bf16.msra.mxu0 %v425
      %696 = vmatprep.subr.bf16.mxu0 0
      %697 = vmatpush1.bf16.msra.mxu0 %v426
      %698 = vmatprep.subr.bf16.mxu0 0
      %699 = vmatpush1.bf16.msra.mxu0 %v427
      %700 = vmatprep.subr.bf16.mxu0 0
      %701 = vmatpush1.bf16.msra.mxu0 %v428
      %702 = vmatprep.subr.bf16.mxu0 0
      %703 = vmatpush1.bf16.msra.mxu0 %v429
      %704 = vmatprep.subr.bf16.mxu0 0
      %705 = vmatpush1.bf16.msra.mxu0 %v430
      %706 = vmatprep.subr.bf16.mxu0 0
      %707 = vmatpush1.bf16.msra.mxu0 0
      %708 = vmatprep.subr.bf16.mxu0 0
      %709 = vmatpush1.bf16.msra.mxu0 0
      %710 = vmatprep.subr.bf16.mxu0 0
      %711 = vmatpush1.bf16.msra.mxu0 0
      %712 = vmatprep.subr.bf16.mxu0 0
      %713 = vmatpush1.bf16.msra.mxu0 0
      %714 = vmatprep.subr.bf16.mxu0 0
      %715 = vmatpush1.bf16.msra.mxu0 0
      %716 = vmatprep.subr.bf16.mxu0 0
      %717 = vmatpush1.bf16.msra.mxu0 0
      %718 = vmatprep.subr.bf16.mxu0 0
      %719 = vmatpush1.bf16.msra.mxu0 0
      %720 = vmatprep.subr.bf16.mxu0 0
      %721 = vmatpush1.bf16.msra.mxu0 0
      %722 = vmatprep.mubr.bf16.mxu0 0
      %723 = vmatmul.mubr.bf16.gmra.mrb[0].mxu0 %v251
      %v724 = vpop.f32.mrb[0].mxu0
      %v725 = vadd.f32 %v588, %v724
      %v726 = vpop.f32.mrb[0].mxu0
      %v727 = vpop.f32.mrb[0].mxu0
      %v728 = vadd.f32 %v592, %v727
      %v729 = vpop.f32.mrb[0].mxu0
      %730 = vmatprep.mubr.bf16.mxu0 0
      %731 = vmatmul.mubr.bf16.gmra.mrb[0].mxu0 %v252
      %v732 = vpop.f32.mrb[0].mxu0
      %v733 = vadd.f32 %v598, %v732
      %v734 = vpop.f32.mrb[0].mxu0
      %v735 = vpop.f32.mrb[0].mxu0
      %v736 = vadd.f32 %v602, %v735
      %v737 = vpop.f32.mrb[0].mxu0
      %738 = vmatprep.mubr.bf16.mxu0 0
      %739 = vmatmul.mubr.bf16.gmra.mrb[0].mxu0 %v253
      %v740 = vpop.f32.mrb[0].mxu0
      %v741 = vadd.f32 %v608, %v740
      %v742 = vpop.f32.mrb[0].mxu0
      %v743 = vpop.f32.mrb[0].mxu0
      %v744 = vadd.f32 %v612, %v743
      %v745 = vpop.f32.mrb[0].mxu0
      %746 = vmatprep.mubr.bf16.mxu0 0
      %747 = vmatmul.mubr.bf16.gmra.mrb[0].mxu0 %v254
      %v748 = vpop.f32.mrb[0].mxu0
      %v749 = vadd.f32 %v618, %v748
      %v750 = vpop.f32.mrb[0].mxu0
      %v751 = vpop.f32.mrb[0].mxu0
      %v752 = vadd.f32 %v622, %v751
      %v753 = vpop.f32.mrb[0].mxu0
      %754 = vmatprep.mubr.bf16.mxu0 0
      %755 = vmatmul.mubr.bf16.gmra.mrb[0].mxu0 %v255
      %v756 = vpop.f32.mrb[0].mxu0
      %v757 = vadd.f32 %v628, %v756
      %v758 = vpop.f32.mrb[0].mxu0
      %v759 = vpop.f32.mrb[0].mxu0
      %v760 = vadd.f32 %v632, %v759
      %v761 = vpop.f32.mrb[0].mxu0
      %762 = vmatprep.mubr.bf16.mxu0 0
      %763 = vmatmul.mubr.bf16.gmra.mrb[0].mxu0 %v256
      %v764 = vpop.f32.mrb[0].mxu0
      %v765 = vadd.f32 %v638, %v764
      %v766 = vpop.f32.mrb[0].mxu0
      %v767 = vpop.f32.mrb[0].mxu0
      %v768 = vadd.f32 %v642, %v767
      %v769 = vpop.f32.mrb[0].mxu0
      %770 = vmatprep.mubr.bf16.mxu0 0
      %771 = vmatmul.mubr.bf16.gmra.mrb[0].mxu0 %v257
      %v772 = vpop.f32.mrb[0].mxu0
      %v773 = vadd.f32 %v648, %v772
      %v774 = vpop.f32.mrb[0].mxu0
      %v775 = vpop.f32.mrb[0].mxu0
      %v776 = vadd.f32 %v652, %v775
      %v777 = vpop.f32.mrb[0].mxu0
      %778 = vmatprep.mubr.bf16.mxu0 0
      %779 = vmatmul.mubr.bf16.gmra.mrb[0].mxu0 %v258
      %v780 = vpop.f32.mrb[0].mxu0
      %v781 = vadd.f32 %v658, %v780
      %v782 = vpop.f32.mrb[0].mxu0
      %v783 = vpop.f32.mrb[0].mxu0
      %v784 = vadd.f32 %v662, %v783
      %v785 = vpop.f32.mrb[0].mxu0
      %786 = vdwg.mxu0
      %v787 = vmax.f32 %v725, 0.0
      %v788 = vmax.f32 %v728, 0.0
      %v789 = vmax.f32 %v733, 0.0
      %v790 = vmax.f32 %v736, 0.0
      %v791 = vmax.f32 %v741, 0.0
      %v792 = vmax.f32 %v744, 0.0
      %v793 = vmax.f32 %v749, 0.0
      %v794 = vmax.f32 %v752, 0.0
      %v795 = vmax.f32 %v757, 0.0
      %v796 = vmax.f32 %v760, 0.0
      %v797 = vmax.f32 %v765, 0.0
      %v798 = vmax.f32 %v768, 0.0
      %v799 = vmax.f32 %v773, 0.0
      %v800 = vmax.f32 %v776, 0.0
      %v801 = vmax.f32 %v781, 0.0
      %v802 = vmax.f32 %v784, 0.0
      %v803 = vpack.c.bf16 %v788, %v787
      %v804 = vpack.c.bf16 %v790, %v789
      %v805 = vpack.c.bf16 %v792, %v791
      %v806 = vpack.c.bf16 %v794, %v793
      %v807 = vpack.c.bf16 %v796, %v795
      %v808 = vpack.c.bf16 %v798, %v797
      %v809 = vpack.c.bf16 %v800, %v799
      %v810 = vpack.c.bf16 %v802, %v801
      %811 = vmatprep.subr.bf16.mxu0 0
      %812 = vmatpush1.bf16.msra.mxu0 %v803
      %813 = vmatprep.subr.bf16.mxu0 0
      %814 = vmatpush1.bf16.msra.mxu0 %v804
      %815 = vmatprep.subr.bf16.mxu0 0
      %816 = vmatpush1.bf16.msra.mxu0 %v805
      %817 = vmatprep.subr.bf16.mxu0 0
      %818 = vmatpush1.bf16.msra.mxu0 %v806
      %819 = vmatprep.subr.bf16.mxu0 0
      %820 = vmatpush1.bf16.msra.mxu0 %v807
      %821 = vmatprep.subr.bf16.mxu0 0
      %822 = vmatpush1.bf16.msra.mxu0 %v808
      %823 = vmatprep.subr.bf16.mxu0 0
      %824 = vmatpush1.bf16.msra.mxu0 %v809
      %825 = vmatprep.subr.bf16.mxu0 0
      %826 = vmatpush1.bf16.msra.mxu0 %v810
      %827 = vmatprep.subr.bf16.mxu0 0
      %828 = vmatpush1.bf16.msra.mxu0 0
      %829 = vmatprep.subr.bf16.mxu0 0
      %830 = vmatpush1.bf16.msra.mxu0 0
      %831 = vmatprep.subr.bf16.mxu0 0
      %832 = vmatpush1.bf16.msra.mxu0 0
      %833 = vmatprep.subr.bf16.mxu0 0
      %834 = vmatpush1.bf16.msra.mxu0 0
      %835 = vmatprep.subr.bf16.mxu0 0
      %836 = vmatpush1.bf16.msra.mxu0 0
      %837 = vmatprep.subr.bf16.mxu0 0
      %838 = vmatpush1.bf16.msra.mxu0 0
      %839 = vmatprep.subr.bf16.mxu0 0
      %840 = vmatpush1.bf16.msra.mxu0 0
      %841 = vmatprep.subr.bf16.mxu0 0
      %842 = vmatpush1.bf16.msra.mxu0 0
      %843 = vmatprep.mubr.bf16.mxu0 0
      %844 = vmatmul.mubr.bf16.gmra.mrb[0].mxu0 %v329
      %v845 = vpop.f32.mrb[0].mxu0
      %v846 = vadd.f32 0.0, %v845
      %v847 = vpop.f32.mrb[0].mxu0
      %v848 = vpop.f32.mrb[0].mxu0
      %v849 = vadd.f32 0.0, %v848
      %v850 = vpop.f32.mrb[0].mxu0
      %851 = vmatprep.mubr.bf16.mxu0 0
      %852 = vmatmul.mubr.bf16.gmra.mrb[0].mxu0 %v330
      %v853 = vpop.f32.mrb[0].mxu0
      %v854 = vadd.f32 0.0, %v853
      %v855 = vpop.f32.mrb[0].mxu0
      %v856 = vpop.f32.mrb[0].mxu0
      %v857 = vadd.f32 0.0, %v856
      %v858 = vpop.f32.mrb[0].mxu0
      %859 = vmatprep.mubr.bf16.mxu0 0
      %860 = vmatmul.mubr.bf16.gmra.mrb[0].mxu0 %v331
      %v861 = vpop.f32.mrb[0].mxu0
      %v862 = vadd.f32 0.0, %v861
      %v863 = vpop.f32.mrb[0].mxu0
      %v864 = vpop.f32.mrb[0].mxu0
      %v865 = vadd.f32 0.0, %v864
      %v866 = vpop.f32.mrb[0].mxu0
      %867 = vmatprep.mubr.bf16.mxu0 0
      %868 = vmatmul.mubr.bf16.gmra.mrb[0].mxu0 %v332
      %v869 = vpop.f32.mrb[0].mxu0
      %v870 = vadd.f32 0.0, %v869
      %v871 = vpop.f32.mrb[0].mxu0
      %v872 = vpop.f32.mrb[0].mxu0
      %v873 = vadd.f32 0.0, %v872
      %v874 = vpop.f32.mrb[0].mxu0
      %875 = vmatprep.mubr.bf16.mxu0 0
      %876 = vmatmul.mubr.bf16.gmra.mrb[0].mxu0 %v333
      %v877 = vpop.f32.mrb[0].mxu0
      %v878 = vadd.f32 0.0, %v877
      %v879 = vpop.f32.mrb[0].mxu0
      %v880 = vpop.f32.mrb[0].mxu0
      %v881 = vadd.f32 0.0, %v880
      %v882 = vpop.f32.mrb[0].mxu0
      %883 = vmatprep.mubr.bf16.mxu0 0
      %884 = vmatmul.mubr.bf16.gmra.mrb[0].mxu0 %v334
      %v885 = vpop.f32.mrb[0].mxu0
      %v886 = vadd.f32 0.0, %v885
      %v887 = vpop.f32.mrb[0].mxu0
      %v888 = vpop.f32.mrb[0].mxu0
      %v889 = vadd.f32 0.0, %v888
      %v890 = vpop.f32.mrb[0].mxu0
      %891 = vmatprep.mubr.bf16.mxu0 0
      %892 = vmatmul.mubr.bf16.gmra.mrb[0].mxu0 %v335
      %v893 = vpop.f32.mrb[0].mxu0
      %v894 = vadd.f32 0.0, %v893
      %v895 = vpop.f32.mrb[0].mxu0
      %v896 = vpop.f32.mrb[0].mxu0
      %v897 = vadd.f32 0.0, %v896
      %v898 = vpop.f32.mrb[0].mxu0
      %899 = vmatprep.mubr.bf16.mxu0 0
      %900 = vmatmul.mubr.bf16.gmra.mrb[0].mxu0 %v336
      %v901 = vpop.f32.mrb[0].mxu0
      %v902 = vadd.f32 0.0, %v901
      %v903 = vpop.f32.mrb[0].mxu0
      %v904 = vpop.f32.mrb[0].mxu0
      %v905 = vadd.f32 0.0, %v904
      %v906 = vpop.f32.mrb[0].mxu0
      %907 = vdwg.mxu0
      %v908 = vadd.f32 %v407, %v846
      %v909 = vadd.f32 %v408, %v849
      %v910 = vadd.f32 %v409, %v854
      %v911 = vadd.f32 %v410, %v857
      %v912 = vadd.f32 %v411, %v862
      %v913 = vadd.f32 %v412, %v865
      %v914 = vadd.f32 %v413, %v870
      %v915 = vadd.f32 %v414, %v873
      %v916 = vadd.f32 %v415, %v878
      %v917 = vadd.f32 %v416, %v881
      %v918 = vadd.f32 %v417, %v886
      %v919 = vadd.f32 %v418, %v889
      %v920 = vadd.f32 %v419, %v894
      %v921 = vadd.f32 %v420, %v897
      %v922 = vadd.f32 %v421, %v902
      %v923 = vadd.f32 %v422, %v905
      %v924 = vpack.c.bf16 %v909, %v908
      %v925 = vpack.c.bf16 %v911, %v910
      %v926 = vpack.c.bf16 %v913, %v912
      %v927 = vpack.c.bf16 %v915, %v914
      %v928 = vpack.c.bf16 %v917, %v916
      %v929 = vpack.c.bf16 %v919, %v918
      %v930 = vpack.c.bf16 %v921, %v920
      %v931 = vpack.c.bf16 %v923, %v922
      %s932 = smul.u32 %s402, 16
      %s933 = smul.addr %s932, 4
      %s934 = scalar_lea.vmem [#allocation10], %s933
      %v935 = vld [vmem:[%s934] sm:$0xf]
      %v936 = vld [vmem:[%s934 + $0x4] sm:$0xf]
      %v937 = vld [vmem:[%s934 + $0x8] sm:$0xf]
      %v938 = vld [vmem:[%s934 + $0xc] sm:$0xf]
      %v939 = vld [vmem:[%s934 + $0x10] sm:$0xf]
      %v940 = vld [vmem:[%s934 + $0x14] sm:$0xf]
      %v941 = vld [vmem:[%s934 + $0x18] sm:$0xf]
      %v942 = vld [vmem:[%s934 + $0x1c] sm:$0xf]
      %v943 = vld [vmem:[%s934 + $0x20] sm:$0xf]
      %v944 = vld [vmem:[%s934 + $0x24] sm:$0xf]
      %v945 = vld [vmem:[%s934 + $0x28] sm:$0xf]
      %v946 = vld [vmem:[%s934 + $0x2c] sm:$0xf]
      %v947 = vld [vmem:[%s934 + $0x30] sm:$0xf]
      %v948 = vld [vmem:[%s934 + $0x34] sm:$0xf]
      %v949 = vld [vmem:[%s934 + $0x38] sm:$0xf]
      %v950 = vld [vmem:[%s934 + $0x3c] sm:$0xf]
      %s951 = scalar_lea.vmem %s8, %s402
      %v952 = vld [vmem:[%s951] sm:$0x1]
      %v954 = vlaneseq
      %v955 = vshrl.u32 %v954, 7
      %v956 = vsub.s32 0, %v955
      %v957 = vrot.slane %v952, %v956
      %v975 = vunpack.c.l.b16 %v935
      %v976 = vunpack.c.l.b16 %v936
      %v977 = vunpack.c.l.b16 %v937
      %v978 = vunpack.c.l.b16 %v938
      %v979 = vunpack.c.l.b16 %v939
      %v980 = vunpack.c.l.b16 %v940
      %v981 = vunpack.c.l.b16 %v941
      %v982 = vunpack.c.l.b16 %v942
      %v983 = vunpack.c.l.b16 %v943
      %v984 = vunpack.c.l.b16 %v944
      %v985 = vunpack.c.l.b16 %v945
      %v986 = vunpack.c.l.b16 %v946
      %v987 = vunpack.c.l.b16 %v947
      %v988 = vunpack.c.l.b16 %v948
      %v989 = vunpack.c.l.b16 %v949
      %v990 = vunpack.c.l.b16 %v950
      %v991 = vpack.c.b16 %v976, %v975
      %v992 = vpack.c.b16 %v978, %v977
      %v993 = vpack.c.b16 %v980, %v979
      %v994 = vpack.c.b16 %v982, %v981
      %v995 = vpack.c.b16 %v984, %v983
      %v996 = vpack.c.b16 %v986, %v985
      %v997 = vpack.c.b16 %v988, %v987
      %v998 = vpack.c.b16 %v990, %v989
      %1007 = vmatprep.subr.bf16.mxu0 0
      %1008 = vmatpush1.bf16.msra.mxu0 %v991
      %1009 = vmatprep.subr.bf16.mxu0 0
      %1010 = vmatpush1.bf16.msra.mxu0 %v992
      %1011 = vmatprep.subr.bf16.mxu0 0
      %1012 = vmatpush1.bf16.msra.mxu0 %v993
      %1013 = vmatprep.subr.bf16.mxu0 0
      %1014 = vmatpush1.bf16.msra.mxu0 %v994
      %1015 = vmatprep.subr.bf16.mxu0 0
      %1016 = vmatpush1.bf16.msra.mxu0 %v995
      %1017 = vmatprep.subr.bf16.mxu0 0
      %1018 = vmatpush1.bf16.msra.mxu0 %v996
      %1019 = vmatprep.subr.bf16.mxu0 0
      %1020 = vmatpush1.bf16.msra.mxu0 %v997
      %1021 = vmatprep.subr.bf16.mxu0 0
      %1022 = vmatpush1.bf16.msra.mxu0 %v998
      %1023 = vmatprep.subr.bf16.mxu0 0
      %1024 = vmatpush1.bf16.msra.mxu0 0
      %1025 = vmatprep.subr.bf16.mxu0 0
      %1026 = vmatpush1.bf16.msra.mxu0 0
      %1027 = vmatprep.subr.bf16.mxu0 0
      %1028 = vmatpush1.bf16.msra.mxu0 0
      %1029 = vmatprep.subr.bf16.mxu0 0
      %1030 = vmatpush1.bf16.msra.mxu0 0
      %1031 = vmatprep.subr.bf16.mxu0 0
      %1032 = vmatpush1.bf16.msra.mxu0 0
      %1033 = vmatprep.subr.bf16.mxu0 0
      %1034 = vmatpush1.bf16.msra.mxu0 0
      %1035 = vmatprep.subr.bf16.mxu0 0
      %1036 = vmatpush1.bf16.msra.mxu0 0
      %1037 = vmatprep.subr.bf16.mxu0 0
      %1038 = vmatpush1.bf16.msra.mxu0 0
      %1039 = vmatprep.mubr.bf16.mxu0 0
      %1040 = vmatmul.mubr.bf16.gmra.mrb[0].mxu0 %v924
      %v1041 = vpop.f32.mrb[0].mxu0
      %v1042 = vadd.f32 %v957, %v1041
      %v1043 = vpop.f32.mrb[0].mxu0
      %v1044 = vpop.f32.mrb[0].mxu0
      %v1045 = vadd.f32 %v957, %v1044
      %v1046 = vpop.f32.mrb[0].mxu0
      %1047 = vmatprep.mubr.bf16.mxu0 0
      %1048 = vmatmul.mubr.bf16.gmra.mrb[0].mxu0 %v925
      %v1049 = vpop.f32.mrb[0].mxu0
      %v1050 = vadd.f32 %v957, %v1049
      %v1051 = vpop.f32.mrb[0].mxu0
      %v1052 = vpop.f32.mrb[0].mxu0
      %v1053 = vadd.f32 %v957, %v1052
      %v1054 = vpop.f32.mrb[0].mxu0
      %1055 = vmatprep.mubr.bf16.mxu0 0
      %1056 = vmatmul.mubr.bf16.gmra.mrb[0].mxu0 %v926
      %v1057 = vpop.f32.mrb[0].mxu0
      %v1058 = vadd.f32 %v957, %v1057
      %v1059 = vpop.f32.mrb[0].mxu0
      %v1060 = vpop.f32.mrb[0].mxu0
      %v1061 = vadd.f32 %v957, %v1060
      %v1062 = vpop.f32.mrb[0].mxu0
      %1063 = vmatprep.mubr.bf16.mxu0 0
      %1064 = vmatmul.mubr.bf16.gmra.mrb[0].mxu0 %v927
      %v1065 = vpop.f32.mrb[0].mxu0
      %v1066 = vadd.f32 %v957, %v1065
      %v1067 = vpop.f32.mrb[0].mxu0
      %v1068 = vpop.f32.mrb[0].mxu0
      %v1069 = vadd.f32 %v957, %v1068
      %v1070 = vpop.f32.mrb[0].mxu0
      %1071 = vmatprep.mubr.bf16.mxu0 0
      %1072 = vmatmul.mubr.bf16.gmra.mrb[0].mxu0 %v928
      %v1073 = vpop.f32.mrb[0].mxu0
      %v1074 = vadd.f32 %v957, %v1073
      %v1075 = vpop.f32.mrb[0].mxu0
      %v1076 = vpop.f32.mrb[0].mxu0
      %v1077 = vadd.f32 %v957, %v1076
      %v1078 = vpop.f32.mrb[0].mxu0
      %1079 = vmatprep.mubr.bf16.mxu0 0
      %1080 = vmatmul.mubr.bf16.gmra.mrb[0].mxu0 %v929
      %v1081 = vpop.f32.mrb[0].mxu0
      %v1082 = vadd.f32 %v957, %v1081
      %v1083 = vpop.f32.mrb[0].mxu0
      %v1084 = vpop.f32.mrb[0].mxu0
      %v1085 = vadd.f32 %v957, %v1084
      %v1086 = vpop.f32.mrb[0].mxu0
      %1087 = vmatprep.mubr.bf16.mxu0 0
      %1088 = vmatmul.mubr.bf16.gmra.mrb[0].mxu0 %v930
      %v1089 = vpop.f32.mrb[0].mxu0
      %v1090 = vadd.f32 %v957, %v1089
      %v1091 = vpop.f32.mrb[0].mxu0
      %v1092 = vpop.f32.mrb[0].mxu0
      %v1093 = vadd.f32 %v957, %v1092
      %v1094 = vpop.f32.mrb[0].mxu0
      %1095 = vmatprep.mubr.bf16.mxu0 0
      %1096 = vmatmul.mubr.bf16.gmra.mrb[0].mxu0 %v931
      %v1097 = vpop.f32.mrb[0].mxu0
      %v1098 = vadd.f32 %v957, %v1097
      %v1099 = vpop.f32.mrb[0].mxu0
      %v1100 = vpop.f32.mrb[0].mxu0
      %v1101 = vadd.f32 %v957, %v1100
      %v1102 = vpop.f32.mrb[0].mxu0
      %1103 = vdwg.mxu0
      %v1104 = vmax.f32 %v1042, 0.0
      %v1105 = vmax.f32 %v1045, 0.0
      %v1106 = vmax.f32 %v1050, 0.0
      %v1107 = vmax.f32 %v1053, 0.0
      %v1108 = vmax.f32 %v1058, 0.0
      %v1109 = vmax.f32 %v1061, 0.0
      %v1110 = vmax.f32 %v1066, 0.0
      %v1111 = vmax.f32 %v1069, 0.0
      %v1112 = vmax.f32 %v1074, 0.0
      %v1113 = vmax.f32 %v1077, 0.0
      %v1114 = vmax.f32 %v1082, 0.0
      %v1115 = vmax.f32 %v1085, 0.0
      %v1116 = vmax.f32 %v1090, 0.0
      %v1117 = vmax.f32 %v1093, 0.0
      %v1118 = vmax.f32 %v1098, 0.0
      %v1119 = vmax.f32 %v1101, 0.0
      %v1120 = vpack.c.bf16 %v1105, %v1104
      %v1121 = vpack.c.bf16 %v1107, %v1106
      %v1122 = vpack.c.bf16 %v1109, %v1108
      %v1123 = vpack.c.bf16 %v1111, %v1110
      %v1124 = vpack.c.bf16 %v1113, %v1112
      %v1125 = vpack.c.bf16 %v1115, %v1114
      %v1126 = vpack.c.bf16 %v1117, %v1116
      %v1127 = vpack.c.bf16 %v1119, %v1118
      %s1128 = smul.addr %s932, 4
      %s1129 = scalar_lea.vmem [#allocation11], %s1128
      %v1130 = vld [vmem:[%s1129] sm:$0xf]
      %v1131 = vld [vmem:[%s1129 + $0x4] sm:$0xf]
      %v1132 = vld [vmem:[%s1129 + $0x8] sm:$0xf]
      %v1133 = vld [vmem:[%s1129 + $0xc] sm:$0xf]
      %v1134 = vld [vmem:[%s1129 + $0x10] sm:$0xf]
      %v1135 = vld [vmem:[%s1129 + $0x14] sm:$0xf]
      %v1136 = vld [vmem:[%s1129 + $0x18] sm:$0xf]
      %v1137 = vld [vmem:[%s1129 + $0x1c] sm:$0xf]
      %v1138 = vld [vmem:[%s1129 + $0x20] sm:$0xf]
      %v1139 = vld [vmem:[%s1129 + $0x24] sm:$0xf]
      %v1140 = vld [vmem:[%s1129 + $0x28] sm:$0xf]
      %v1141 = vld [vmem:[%s1129 + $0x2c] sm:$0xf]
      %v1142 = vld [vmem:[%s1129 + $0x30] sm:$0xf]
      %v1143 = vld [vmem:[%s1129 + $0x34] sm:$0xf]
      %v1144 = vld [vmem:[%s1129 + $0x38] sm:$0xf]
      %v1145 = vld [vmem:[%s1129 + $0x3c] sm:$0xf]
      %s1146 = scalar_lea.vmem %s10, %s402
      %v1147 = vld [vmem:[%s1146] sm:$0x1]
      %v1149 = vlaneseq
      %v1150 = vshrl.u32 %v1149, 7
      %v1151 = vsub.s32 0, %v1150
      %v1152 = vrot.slane %v1147, %v1151
      %v1170 = vunpack.c.l.b16 %v1130
      %v1171 = vunpack.c.l.b16 %v1131
      %v1172 = vunpack.c.l.b16 %v1132
      %v1173 = vunpack.c.l.b16 %v1133
      %v1174 = vunpack.c.l.b16 %v1134
      %v1175 = vunpack.c.l.b16 %v1135
      %v1176 = vunpack.c.l.b16 %v1136
      %v1177 = vunpack.c.l.b16 %v1137
      %v1178 = vunpack.c.l.b16 %v1138
      %v1179 = vunpack.c.l.b16 %v1139
      %v1180 = vunpack.c.l.b16 %v1140
      %v1181 = vunpack.c.l.b16 %v1141
      %v1182 = vunpack.c.l.b16 %v1142
      %v1183 = vunpack.c.l.b16 %v1143
      %v1184 = vunpack.c.l.b16 %v1144
      %v1185 = vunpack.c.l.b16 %v1145
      %v1186 = vpack.c.b16 %v1171, %v1170
      %v1187 = vpack.c.b16 %v1173, %v1172
      %v1188 = vpack.c.b16 %v1175, %v1174
      %v1189 = vpack.c.b16 %v1177, %v1176
      %v1190 = vpack.c.b16 %v1179, %v1178
      %v1191 = vpack.c.b16 %v1181, %v1180
      %v1192 = vpack.c.b16 %v1183, %v1182
      %v1193 = vpack.c.b16 %v1185, %v1184
      %1202 = vmatprep.subr.bf16.mxu0 0
      %1203 = vmatpush1.bf16.msra.mxu0 %v1186
      %1204 = vmatprep.subr.bf16.mxu0 0
      %1205 = vmatpush1.bf16.msra.mxu0 %v1187
      %1206 = vmatprep.subr.bf16.mxu0 0
      %1207 = vmatpush1.bf16.msra.mxu0 %v1188
      %1208 = vmatprep.subr.bf16.mxu0 0
      %1209 = vmatpush1.bf16.msra.mxu0 %v1189
      %1210 = vmatprep.subr.bf16.mxu0 0
      %1211 = vmatpush1.bf16.msra.mxu0 %v1190
      %1212 = vmatprep.subr.bf16.mxu0 0
      %1213 = vmatpush1.bf16.msra.mxu0 %v1191
      %1214 = vmatprep.subr.bf16.mxu0 0
      %1215 = vmatpush1.bf16.msra.mxu0 %v1192
      %1216 = vmatprep.subr.bf16.mxu0 0
      %1217 = vmatpush1.bf16.msra.mxu0 %v1193
      %1218 = vmatprep.subr.bf16.mxu0 0
      %1219 = vmatpush1.bf16.msra.mxu0 0
      %1220 = vmatprep.subr.bf16.mxu0 0
      %1221 = vmatpush1.bf16.msra.mxu0 0
      %1222 = vmatprep.subr.bf16.mxu0 0
      %1223 = vmatpush1.bf16.msra.mxu0 0
      %1224 = vmatprep.subr.bf16.mxu0 0
      %1225 = vmatpush1.bf16.msra.mxu0 0
      %1226 = vmatprep.subr.bf16.mxu0 0
      %1227 = vmatpush1.bf16.msra.mxu0 0
      %1228 = vmatprep.subr.bf16.mxu0 0
      %1229 = vmatpush1.bf16.msra.mxu0 0
      %1230 = vmatprep.subr.bf16.mxu0 0
      %1231 = vmatpush1.bf16.msra.mxu0 0
      %1232 = vmatprep.subr.bf16.mxu0 0
      %1233 = vmatpush1.bf16.msra.mxu0 0
      %1234 = vmatprep.mubr.bf16.mxu0 0
      %1235 = vmatmul.mubr.bf16.gmra.mrb[0].mxu0 %v1120
      %v1236 = vpop.f32.mrb[0].mxu0
      %v1237 = vadd.f32 %v1152, %v1236
      %v1238 = vpop.f32.mrb[0].mxu0
      %v1239 = vpop.f32.mrb[0].mxu0
      %v1240 = vadd.f32 %v1152, %v1239
      %v1241 = vpop.f32.mrb[0].mxu0
      %1242 = vmatprep.mubr.bf16.mxu0 0
      %1243 = vmatmul.mubr.bf16.gmra.mrb[0].mxu0 %v1121
      %v1244 = vpop.f32.mrb[0].mxu0
      %v1245 = vadd.f32 %v1152, %v1244
      %v1246 = vpop.f32.mrb[0].mxu0
      %v1247 = vpop.f32.mrb[0].mxu0
      %v1248 = vadd.f32 %v1152, %v1247
      %v1249 = vpop.f32.mrb[0].mxu0
      %1250 = vmatprep.mubr.bf16.mxu0 0
      %1251 = vmatmul.mubr.bf16.gmra.mrb[0].mxu0 %v1122
      %v1252 = vpop.f32.mrb[0].mxu0
      %v1253 = vadd.f32 %v1152, %v1252
      %v1254 = vpop.f32.mrb[0].mxu0
      %v1255 = vpop.f32.mrb[0].mxu0
      %v1256 = vadd.f32 %v1152, %v1255
      %v1257 = vpop.f32.mrb[0].mxu0
      %1258 = vmatprep.mubr.bf16.mxu0 0
      %1259 = vmatmul.mubr.bf16.gmra.mrb[0].mxu0 %v1123
      %v1260 = vpop.f32.mrb[0].mxu0
      %v1261 = vadd.f32 %v1152, %v1260
      %v1262 = vpop.f32.mrb[0].mxu0
      %v1263 = vpop.f32.mrb[0].mxu0
      %v1264 = vadd.f32 %v1152, %v1263
      %v1265 = vpop.f32.mrb[0].mxu0
      %1266 = vmatprep.mubr.bf16.mxu0 0
      %1267 = vmatmul.mubr.bf16.gmra.mrb[0].mxu0 %v1124
      %v1268 = vpop.f32.mrb[0].mxu0
      %v1269 = vadd.f32 %v1152, %v1268
      %v1270 = vpop.f32.mrb[0].mxu0
      %v1271 = vpop.f32.mrb[0].mxu0
      %v1272 = vadd.f32 %v1152, %v1271
      %v1273 = vpop.f32.mrb[0].mxu0
      %1274 = vmatprep.mubr.bf16.mxu0 0
      %1275 = vmatmul.mubr.bf16.gmra.mrb[0].mxu0 %v1125
      %v1276 = vpop.f32.mrb[0].mxu0
      %v1277 = vadd.f32 %v1152, %v1276
      %v1278 = vpop.f32.mrb[0].mxu0
      %v1279 = vpop.f32.mrb[0].mxu0
      %v1280 = vadd.f32 %v1152, %v1279
      %v1281 = vpop.f32.mrb[0].mxu0
      %1282 = vmatprep.mubr.bf16.mxu0 0
      %1283 = vmatmul.mubr.bf16.gmra.mrb[0].mxu0 %v1126
      %v1284 = vpop.f32.mrb[0].mxu0
      %v1285 = vadd.f32 %v1152, %v1284
      %v1286 = vpop.f32.mrb[0].mxu0
      %v1287 = vpop.f32.mrb[0].mxu0
      %v1288 = vadd.f32 %v1152, %v1287
      %v1289 = vpop.f32.mrb[0].mxu0
      %1290 = vmatprep.mubr.bf16.mxu0 0
      %1291 = vmatmul.mubr.bf16.gmra.mrb[0].mxu0 %v1127
      %v1292 = vpop.f32.mrb[0].mxu0
      %v1293 = vadd.f32 %v1152, %v1292
      %v1294 = vpop.f32.mrb[0].mxu0
      %v1295 = vpop.f32.mrb[0].mxu0
      %v1296 = vadd.f32 %v1152, %v1295
      %v1297 = vpop.f32.mrb[0].mxu0
      %1298 = vdwg.mxu0
      %v1299 = vmax.f32 %v1237, 0.0
      %v1300 = vmax.f32 %v1240, 0.0
      %v1301 = vmax.f32 %v1245, 0.0
      %v1302 = vmax.f32 %v1248, 0.0
      %v1303 = vmax.f32 %v1253, 0.0
      %v1304 = vmax.f32 %v1256, 0.0
      %v1305 = vmax.f32 %v1261, 0.0
      %v1306 = vmax.f32 %v1264, 0.0
      %v1307 = vmax.f32 %v1269, 0.0
      %v1308 = vmax.f32 %v1272, 0.0
      %v1309 = vmax.f32 %v1277, 0.0
      %v1310 = vmax.f32 %v1280, 0.0
      %v1311 = vmax.f32 %v1285, 0.0
      %v1312 = vmax.f32 %v1288, 0.0
      %v1313 = vmax.f32 %v1293, 0.0
      %v1314 = vmax.f32 %v1296, 0.0
      %v1315 = vpack.c.bf16 %v1300, %v1299
      %v1316 = vpack.c.bf16 %v1302, %v1301
      %v1317 = vpack.c.bf16 %v1304, %v1303
      %v1318 = vpack.c.bf16 %v1306, %v1305
      %v1319 = vpack.c.bf16 %v1308, %v1307
      %v1320 = vpack.c.bf16 %v1310, %v1309
      %v1321 = vpack.c.bf16 %v1312, %v1311
      %v1322 = vpack.c.bf16 %v1314, %v1313
      %1323 = vmatprep.subr.bf16.mxu0 0
      %1324 = vmatpush1.bf16.msra.mxu0 %v1315
      %1325 = vmatprep.subr.bf16.mxu0 0
      %1326 = vmatpush1.bf16.msra.mxu0 %v1316
      %1327 = vmatprep.subr.bf16.mxu0 0
      %1328 = vmatpush1.bf16.msra.mxu0 %v1317
      %1329 = vmatprep.subr.bf16.mxu0 0
      %1330 = vmatpush1.bf16.msra.mxu0 %v1318
      %1331 = vmatprep.subr.bf16.mxu0 0
      %1332 = vmatpush1.bf16.msra.mxu0 %v1319
      %1333 = vmatprep.subr.bf16.mxu0 0
      %1334 = vmatpush1.bf16.msra.mxu0 %v1320
      %1335 = vmatprep.subr.bf16.mxu0 0
      %1336 = vmatpush1.bf16.msra.mxu0 %v1321
      %1337 = vmatprep.subr.bf16.mxu0 0
      %1338 = vmatpush1.bf16.msra.mxu0 %v1322
      %1339 = vmatprep.subr.bf16.mxu0 0
      %1340 = vmatpush1.bf16.msra.mxu0 0
      %1341 = vmatprep.subr.bf16.mxu0 0
      %1342 = vmatpush1.bf16.msra.mxu0 0
      %1343 = vmatprep.subr.bf16.mxu0 0
      %1344 = vmatpush1.bf16.msra.mxu0 0
      %1345 = vmatprep.subr.bf16.mxu0 0
      %1346 = vmatpush1.bf16.msra.mxu0 0
      %1347 = vmatprep.subr.bf16.mxu0 0
      %1348 = vmatpush1.bf16.msra.mxu0 0
      %1349 = vmatprep.subr.bf16.mxu0 0
      %1350 = vmatpush1.bf16.msra.mxu0 0
      %1351 = vmatprep.subr.bf16.mxu0 0
      %1352 = vmatpush1.bf16.msra.mxu0 0
      %1353 = vmatprep.subr.bf16.mxu0 0
      %1354 = vmatpush1.bf16.msra.mxu0 0
      %1355 = vmatprep.mubr.bf16.mxu0 0
      %1356 = vmatmul.mubr.bf16.gmra.mrb[0].mxu0 %v345
      %v1357 = vpop.f32.mrb[0].mxu0
      %v1358 = vadd.f32 0.0, %v1357
      %v1359 = vpop.f32.mrb[0].mxu0
      %v1360 = vpop.f32.mrb[0].mxu0
      %v1361 = vpop.f32.mrb[0].mxu0
      %1362 = vdwg.mxu0
      %v1363 = vpack.c.bf16 %v1358, %v1358
      %s1364 = smul.addr %s932, 4
      %s1365 = scalar_lea.vmem [#allocation13], %s1364
      %v1366 = vld [vmem:[%s1365] sm:$0xf]
      %v1367 = vld [vmem:[%s1365 + $0x4] sm:$0xf]
      %v1368 = vld [vmem:[%s1365 + $0x8] sm:$0xf]
      %v1369 = vld [vmem:[%s1365 + $0xc] sm:$0xf]
      %v1370 = vld [vmem:[%s1365 + $0x10] sm:$0xf]
      %v1371 = vld [vmem:[%s1365 + $0x14] sm:$0xf]
      %v1372 = vld [vmem:[%s1365 + $0x18] sm:$0xf]
      %v1373 = vld [vmem:[%s1365 + $0x1c] sm:$0xf]
      %v1374 = vld [vmem:[%s1365 + $0x20] sm:$0xf]
      %v1375 = vld [vmem:[%s1365 + $0x24] sm:$0xf]
      %v1376 = vld [vmem:[%s1365 + $0x28] sm:$0xf]
      %v1377 = vld [vmem:[%s1365 + $0x2c] sm:$0xf]
      %v1378 = vld [vmem:[%s1365 + $0x30] sm:$0xf]
      %v1379 = vld [vmem:[%s1365 + $0x34] sm:$0xf]
      %v1380 = vld [vmem:[%s1365 + $0x38] sm:$0xf]
      %v1381 = vld [vmem:[%s1365 + $0x3c] sm:$0xf]
      %v1398 = vunpack.c.l.b16 %v1366
      %v1399 = vunpack.c.l.b16 %v1367
      %v1400 = vunpack.c.l.b16 %v1368
      %v1401 = vunpack.c.l.b16 %v1369
      %v1402 = vunpack.c.l.b16 %v1370
      %v1403 = vunpack.c.l.b16 %v1371
      %v1404 = vunpack.c.l.b16 %v1372
      %v1405 = vunpack.c.l.b16 %v1373
      %v1406 = vunpack.c.l.b16 %v1374
      %v1407 = vunpack.c.l.b16 %v1375
      %v1408 = vunpack.c.l.b16 %v1376
      %v1409 = vunpack.c.l.b16 %v1377
      %v1410 = vunpack.c.l.b16 %v1378
      %v1411 = vunpack.c.l.b16 %v1379
      %v1412 = vunpack.c.l.b16 %v1380
      %v1413 = vunpack.c.l.b16 %v1381
      %v1414 = vpack.c.b16 %v1399, %v1398
      %v1415 = vpack.c.b16 %v1401, %v1400
      %v1416 = vpack.c.b16 %v1403, %v1402
      %v1417 = vpack.c.b16 %v1405, %v1404
      %v1418 = vpack.c.b16 %v1407, %v1406
      %v1419 = vpack.c.b16 %v1409, %v1408
      %v1420 = vpack.c.b16 %v1411, %v1410
      %v1421 = vpack.c.b16 %v1413, %v1412
      %1430 = vmatprep.subr.bf16.mxu0 0
      %1431 = vmatpush1.bf16.msra.mxu0 %v1414
      %1432 = vmatprep.subr.bf16.mxu0 0
      %1433 = vmatpush1.bf16.msra.mxu0 %v1415
      %1434 = vmatprep.subr.bf16.mxu0 0
      %1435 = vmatpush1.bf16.msra.mxu0 %v1416
      %1436 = vmatprep.subr.bf16.mxu0 0
      %1437 = vmatpush1.bf16.msra.mxu0 %v1417
      %1438 = vmatprep.subr.bf16.mxu0 0
      %1439 = vmatpush1.bf16.msra.mxu0 %v1418
      %1440 = vmatprep.subr.bf16.mxu0 0
      %1441 = vmatpush1.bf16.msra.mxu0 %v1419
      %1442 = vmatprep.subr.bf16.mxu0 0
      %1443 = vmatpush1.bf16.msra.mxu0 %v1420
      %1444 = vmatprep.subr.bf16.mxu0 0
      %1445 = vmatpush1.bf16.msra.mxu0 %v1421
      %1446 = vmatprep.subr.bf16.mxu0 0
      %1447 = vmatpush1.bf16.msra.mxu0 0
      %1448 = vmatprep.subr.bf16.mxu0 0
      %1449 = vmatpush1.bf16.msra.mxu0 0
      %1450 = vmatprep.subr.bf16.mxu0 0
      %1451 = vmatpush1.bf16.msra.mxu0 0
      %1452 = vmatprep.subr.bf16.mxu0 0
      %1453 = vmatpush1.bf16.msra.mxu0 0
      %1454 = vmatprep.subr.bf16.mxu0 0
      %1455 = vmatpush1.bf16.msra.mxu0 0
      %1456 = vmatprep.subr.bf16.mxu0 0
      %1457 = vmatpush1.bf16.msra.mxu0 0
      %1458 = vmatprep.subr.bf16.mxu0 0
      %1459 = vmatpush1.bf16.msra.mxu0 0
      %1460 = vmatprep.subr.bf16.mxu0 0
      %1461 = vmatpush1.bf16.msra.mxu0 0
      %1462 = vmatprep.mubr.bf16.mxu0 0
      %1463 = vmatmul.mubr.bf16.gmra.mrb[0].mxu0 %v1363
      %v1464 = vpop.f32.mrb[0].mxu0
      %v1465 = vadd.f32 0.0, %v1464
      %v1466 = vpop.f32.mrb[0].mxu0
      %v1467 = vpop.f32.mrb[0].mxu0
      %v1468 = vpop.f32.mrb[0].mxu0
      %1469 = vdwg.mxu0
      %v1470 = vadd.f32 %v439, %v1465
    $region86: #{tpu_custom_call.1} parent=1 // loop_footer
      %s406 = sadd.s32 1, %s402
    $region87: #{tpu_custom_call.1} parent=1 // loop_footer_branch
      %401 = sbr.rel target = $region83
    $region88: #{tpu_custom_call.1} parent=1 // loop_exit
      _
    %1471 = vst [vmem:[#allocation14] sm:$0x3] %v439
    // Predicated region
    $region89: #{tpu_custom_call.1} parent=1 // pred_check
      _
    $region90: #{tpu_custom_call.1} parent=1 // pred_check_branch
      %1473 = sbr.rel (0) target = $region92
    $region91: #{tpu_custom_call.1} parent=1 // pred_region
      %s1475 = ssub.s32 32, 32
      %1476 = vsyncadd [#allocation4], %s1475
      %s1478 = sshll.u32 [#allocation14], 4
      %s1479 = int_to_ptr.vmem [resolvable:$true] %s1478
      %1481 = dma.vmem_to_hbm [thread:$0]  %s1479, 32, %s13, [#allocation4]
    $region92: #{tpu_custom_call.1} parent=1 // pred_fallthru
      _
    // Predicated region
    $region93: #{tpu_custom_call.1} parent=1 // pred_check
      _
    $region94: #{tpu_custom_call.1} parent=1 // pred_check_branch
      %1483 = sbr.rel (0) target = $region96
    $region95: #{tpu_custom_call.1} parent=1 // pred_region
      %1484 = dma.done [#allocation4], 32
    $region96: #{tpu_custom_call.1} parent=1 // pred_fallthru
      _
    %1485 = vsyncpa [#allocation3], 1
    %1486 = vsyncpa [#allocation6], 1
    %1487 = vsyncpa [#allocation9], 1
    %1488 = vsyncpa [#allocation12], 1
    %1489 = vsyncpa [#allocation4], 1

</llo_original>
